<compile_context>
chip_gen: v6e
topology: v6e:2x2x1
jax: 0.10.0
libtpu: 0.0.40
codegen_flags: <defaults>
</compile_context>

<pallas_src>
import math

import jax
import jax.numpy as jnp
from jax import lax
from jax.experimental import pallas as pl
from jax.experimental.pallas import tpu as pltpu

# ---------------- small synthetic BERT config ----------------
VOCAB = 100
TYPE_VOCAB = 2
MAX_POS = 16
HIDDEN = 32
HEADS = 2
HEAD_DIM = HIDDEN // HEADS
INTERMEDIATE = 64
LAYERS = 2
LN_EPS = 1e-12  # BERT default
ATTN_SCALE = 1.0 / math.sqrt(HEAD_DIM)
INV_SQRT2 = 1.0 / math.sqrt(2.0)


# ---------------- in-kernel helpers ----------------
def _layernorm(x, g, b):
    mean = jnp.mean(x, axis=-1, keepdims=True)
    xc = x - mean
    var = jnp.mean(xc * xc, axis=-1, keepdims=True)
    return xc * lax.rsqrt(var + LN_EPS) * g + b


def _gelu(x):
    # exact (erf-based) GELU, as in BERT's "gelu"
    return 0.5 * x * (1.0 + lax.erf(x * INV_SQRT2))


# ---------------- single fused encoder kernel ----------------
def _bert_encoder_kernel(emb_ref, qseg_ref, kcode_ref,
                         eg_ref, eb_ref,
                         wqkv_ref, bqkv_ref,
                         wo_ref, bo_ref,
                         ln1g_ref, ln1b_ref,
                         wi_ref, bi_ref,
                         wo2_ref, bo2_ref,
                         ln2g_ref, ln2b_ref,
                         o_ref):
    N = emb_ref.shape[0]

    # --- embedding LayerNorm ---
    x = _layernorm(emb_ref[...], eg_ref[...], eb_ref[...])            # [N, H]

    # --- additive attention bias built in-kernel from O(N) inputs ---
    # qseg[i,0]  = sentence id of query position i
    # kcode[0,j] = sentence id of key j if not padded, else -1
    ok = qseg_ref[...] == kcode_ref[...]                              # [N,1]==[1,N] -> [N,N]
    bias = jnp.where(ok, 0.0, -10000.0)                               # [N, N] f32

    for l in range(LAYERS):
        # ---- fused QKV projection (one MXU pass for Q, K, V) ----
        x_t = x.T                                                     # [H, N]
        qkv_t = jnp.dot(wqkv_ref[l], x_t,
                        preferred_element_type=jnp.float32) + bqkv_ref[l]  # [3H, N]
        wo_l = wo_ref[l]                                              # [H, H]

        # ---- multi-head self-attention, all batches & heads in one step ----
        acc = jnp.zeros((N, HIDDEN), jnp.float32)
        for h in range(HEADS):
            r = h * HEAD_DIM
            q_h = qkv_t[r:r + HEAD_DIM, :].T                          # [N, dh]
            kT_h = qkv_t[HIDDEN + r:HIDDEN + r + HEAD_DIM, :]         # [dh, N]
            v_h = qkv_t[2 * HIDDEN + r:2 * HIDDEN + r + HEAD_DIM, :].T  # [N, dh]

            s = jnp.dot(q_h, kT_h,
                        preferred_element_type=jnp.float32) * ATTN_SCALE + bias
            m = jnp.max(s, axis=-1, keepdims=True)
            p = jnp.exp(s - m)
            p = p * pl.reciprocal(jnp.sum(p, axis=-1, keepdims=True), approx=True)
            ctx = jnp.dot(p, v_h, preferred_element_type=jnp.float32)  # [N, dh]

            # fold the per-head output projection into the accumulation
            acc = acc + jnp.dot(ctx, wo_l[r:r + HEAD_DIM, :],
                                preferred_element_type=jnp.float32)    # [N, H]

        attn_out = acc + bo_ref[l]
        x = _layernorm(attn_out + x, ln1g_ref[l], ln1b_ref[l])

        # ---- feed-forward ----
        h1 = jnp.dot(x, wi_ref[l], preferred_element_type=jnp.float32) + bi_ref[l]
        h1 = _gelu(h1)
        ff = jnp.dot(h1, wo2_ref[l], preferred_element_type=jnp.float32) + bo2_ref[l]
        x = _layernorm(ff + x, ln2g_ref[l], ln2b_ref[l])

    o_ref[...] = x.astype(o_ref.dtype)


# ---------------- parameter construction (deterministic) ----------------
def init_params(key):
    def nrm(k, shape, std=0.02):
        return std * jax.random.normal(k, shape, dtype=jnp.float32)

    ks = iter(jax.random.split(key, 16))
    H3 = 3 * HIDDEN
    return {
        "word_emb": nrm(next(ks), (VOCAB, HIDDEN)),
        "pos_emb":  nrm(next(ks), (MAX_POS, HIDDEN)),
        "type_emb": nrm(next(ks), (TYPE_VOCAB, HIDDEN)),
        "emb_ln_g": jnp.ones((1, HIDDEN), jnp.float32),
        "emb_ln_b": jnp.zeros((1, HIDDEN), jnp.float32),
        # per-layer params stacked on a leading LAYERS axis
        "wqkv_t": nrm(next(ks), (LAYERS, H3, HIDDEN)),   # fused [Wq;Wk;Wv], stored (out,in)
        "bqkv":   jnp.zeros((LAYERS, H3, 1), jnp.float32),
        "wo":     nrm(next(ks), (LAYERS, HIDDEN, HIDDEN)),
        "bo":     jnp.zeros((LAYERS, 1, HIDDEN), jnp.float32),
        "ln1_g":  jnp.ones((LAYERS, 1, HIDDEN), jnp.float32),
        "ln1_b":  jnp.zeros((LAYERS, 1, HIDDEN), jnp.float32),
        "wi":     nrm(next(ks), (LAYERS, HIDDEN, INTERMEDIATE)),
        "bi":     jnp.zeros((LAYERS, 1, INTERMEDIATE), jnp.float32),
        "wo2":    nrm(next(ks), (LAYERS, INTERMEDIATE, HIDDEN)),
        "bo2":    jnp.zeros((LAYERS, 1, HIDDEN), jnp.float32),
        "ln2_g":  jnp.ones((LAYERS, 1, HIDDEN), jnp.float32),
        "ln2_b":  jnp.zeros((LAYERS, 1, HIDDEN), jnp.float32),
    }


# ---------------- forward pass ----------------
@jax.jit
def language_embedding_layer(params, bert_sent, bert_sent_type, bert_sent_mask):
    """Mirrors: BertModel(input_ids, attention_mask, token_type_ids)[0][:, 0, :]."""
    B, S = bert_sent.shape
    N = B * S

    # Embedding gathers stay in JAX glue (table lookups); everything else is
    # done inside the single fused Pallas kernel.
    we = jnp.take(params["word_emb"], bert_sent, axis=0)              # [B,S,H]
    te = jnp.take(params["type_emb"], bert_sent_type, axis=0)         # [B,S,H]
    pe = params["pos_emb"][:S][None, :, :]                            # [1,S,H]
    emb = (we + te + pe).reshape(N, HIDDEN).astype(jnp.float32)       # [N,H]

    # O(N) mask encoding: query segment id and key "code" (segment or -1 if padded)
    seg = jnp.repeat(jnp.arange(B, dtype=jnp.float32), S)             # [N]
    maskf = bert_sent_mask.astype(jnp.float32).reshape(N)             # [N]
    q_seg = seg.reshape(N, 1)
    k_code = jnp.where(maskf > 0.5, seg, -1.0).reshape(1, N)

    vmem = pl.BlockSpec(memory_space=pltpu.MemorySpace.VMEM)
    last_hidden = pl.pallas_call(
        _bert_encoder_kernel,
        out_shape=jax.ShapeDtypeStruct((N, HIDDEN), jnp.float32),
        in_specs=[vmem] * 17,
        out_specs=vmem,
    )(emb, q_seg, k_code,
      params["emb_ln_g"], params["emb_ln_b"],
      params["wqkv_t"], params["bqkv"],
      params["wo"], params["bo"],
      params["ln1_g"], params["ln1_b"],
      params["wi"], params["bi"],
      params["wo2"], params["bo2"],
      params["ln2_g"], params["ln2_b"])

    return last_hidden.reshape(B, S, HIDDEN)[:, 0, :]   # [CLS] embedding, [B, HIDDEN]


# ---------------- main ----------------
if __name__ == "__main__":
    key = jax.random.PRNGKey(0)
    k_param, k_ids, k_type = jax.random.split(key, 3)

    B, S = 2, 8
    params = init_params(k_param)

    bert_sent = jax.random.randint(k_ids, (B, S), 0, VOCAB, dtype=jnp.int32)
    bert_sent_type = jax.random.randint(k_type, (B, S), 0, TYPE_VOCAB, dtype=jnp.int32)
    # second sequence has 2 padded (masked-out) positions
    bert_sent_mask = jnp.array(
        [[1, 1, 1, 1, 1, 1, 1, 1],
         [1, 1, 1, 1, 1, 1, 0, 0]], dtype=jnp.float32)

    out = language_embedding_layer(params, bert_sent, bert_sent_type, bert_sent_mask)
    out = jax.block_until_ready(out)
    assert out.shape == (B, HIDDEN) and out.dtype == jnp.float32
    assert bool(jnp.all(jnp.isfinite(out)))
    print("KERNEL_OK")
</pallas_src>

<mosaic_0001>
module attributes {stable_mosaic.version = 11 : i64} {
  func.func @_bert_encoder_kernel(%arg0: memref<16x32xf32, #tpu.memory_space<vmem>>, %arg1: memref<16x1xf32, #tpu.memory_space<vmem>>, %arg2: memref<1x16xf32, #tpu.memory_space<vmem>>, %arg3: memref<1x32xf32, #tpu.memory_space<vmem>>, %arg4: memref<1x32xf32, #tpu.memory_space<vmem>>, %arg5: memref<2x96x32xf32, #tpu.memory_space<vmem>>, %arg6: memref<2x96x1xf32, #tpu.memory_space<vmem>>, %arg7: memref<2x32x32xf32, #tpu.memory_space<vmem>>, %arg8: memref<2x1x32xf32, #tpu.memory_space<vmem>>, %arg9: memref<2x1x32xf32, #tpu.memory_space<vmem>>, %arg10: memref<2x1x32xf32, #tpu.memory_space<vmem>>, %arg11: memref<2x32x64xf32, #tpu.memory_space<vmem>>, %arg12: memref<2x1x64xf32, #tpu.memory_space<vmem>>, %arg13: memref<2x64x32xf32, #tpu.memory_space<vmem>>, %arg14: memref<2x1x32xf32, #tpu.memory_space<vmem>>, %arg15: memref<2x1x32xf32, #tpu.memory_space<vmem>>, %arg16: memref<2x1x32xf32, #tpu.memory_space<vmem>>, %arg17: memref<16x32xf32, #tpu.memory_space<vmem>>) attributes {dimension_semantics = [], scalar_prefetch = 0 : i64, scratch_operands = 0 : i64, tpu.core_type = #tpu.core_type<tc>} {
    %c0 = arith.constant 0 : index
    %c0_0 = arith.constant 0 : index
    %0 = vector.load %arg0[%c0, %c0_0] : memref<16x32xf32, #tpu.memory_space<vmem>>, vector<16x32xf32>
    %c0_1 = arith.constant 0 : index
    %c0_2 = arith.constant 0 : index
    %1 = vector.load %arg3[%c0_1, %c0_2] : memref<1x32xf32, #tpu.memory_space<vmem>>, vector<1x32xf32>
    %c0_3 = arith.constant 0 : index
    %c0_4 = arith.constant 0 : index
    %2 = vector.load %arg4[%c0_3, %c0_4] : memref<1x32xf32, #tpu.memory_space<vmem>>, vector<1x32xf32>
    %cst = arith.constant dense<0.000000e+00> : vector<16xf32>
    %3 = vector.multi_reduction <add>, %0, %cst [1] : vector<16x32xf32> to vector<16xf32>
    %4 = vector.shape_cast %3 : vector<16xf32> to vector<16x1xf32>
    %cst_5 = arith.constant 3.200000e+01 : f32
    %5 = vector.broadcast %cst_5 : f32 to vector<16x1xf32>
    %6 = arith.divf %4, %5 : vector<16x1xf32>
    %7 = vector.broadcast %6 : vector<16x1xf32> to vector<16x32xf32>
    %8 = arith.subf %0, %7 : vector<16x32xf32>
    %9 = arith.mulf %8, %8 : vector<16x32xf32>
    %cst_6 = arith.constant dense<0.000000e+00> : vector<16xf32>
    %10 = vector.multi_reduction <add>, %9, %cst_6 [1] : vector<16x32xf32> to vector<16xf32>
    %11 = vector.shape_cast %10 : vector<16xf32> to vector<16x1xf32>
    %cst_7 = arith.constant 3.200000e+01 : f32
    %12 = vector.broadcast %cst_7 : f32 to vector<16x1xf32>
    %13 = arith.divf %11, %12 : vector<16x1xf32>
    %cst_8 = arith.constant 9.99999996E-13 : f32
    %14 = vector.broadcast %cst_8 : f32 to vector<16x1xf32>
    %15 = arith.addf %13, %14 : vector<16x1xf32>
    %16 = math.rsqrt %15 : vector<16x1xf32>
    %17 = vector.broadcast %16 : vector<16x1xf32> to vector<16x32xf32>
    %18 = arith.mulf %8, %17 : vector<16x32xf32>
    %19 = vector.broadcast %1 : vector<1x32xf32> to vector<16x32xf32>
    %20 = arith.mulf %18, %19 : vector<16x32xf32>
    %21 = vector.broadcast %2 : vector<1x32xf32> to vector<16x32xf32>
    %22 = arith.addf %20, %21 : vector<16x32xf32>
    %c0_9 = arith.constant 0 : index
    %c0_10 = arith.constant 0 : index
    %23 = vector.load %arg1[%c0_9, %c0_10] : memref<16x1xf32, #tpu.memory_space<vmem>>, vector<16x1xf32>
    %c0_11 = arith.constant 0 : index
    %c0_12 = arith.constant 0 : index
    %24 = vector.load %arg2[%c0_11, %c0_12] : memref<1x16xf32, #tpu.memory_space<vmem>>, vector<1x16xf32>
    %25 = vector.broadcast %23 : vector<16x1xf32> to vector<16x16xf32>
    %26 = vector.broadcast %24 : vector<1x16xf32> to vector<16x16xf32>
    %27 = arith.cmpf oeq, %25, %26 : vector<16x16xf32>
    %cst_13 = arith.constant 0.000000e+00 : f32
    %cst_14 = arith.constant -1.000000e+04 : f32
    %28 = vector.broadcast %cst_13 : f32 to vector<16x16xf32>
    %29 = vector.broadcast %cst_14 : f32 to vector<16x16xf32>
    %30 = arith.select %27, %28, %29 : vector<16x16xi1>, vector<16x16xf32>
    %31 = tpu.transpose %22, [1, 0] : vector<16x32xf32> -> vector<32x16xf32>
    %c0_15 = arith.constant 0 : index
    %c0_16 = arith.constant 0 : index
    %c0_17 = arith.constant 0 : index
    %32 = vector.load %arg5[%c0_15, %c0_16, %c0_17] : memref<2x96x32xf32, #tpu.memory_space<vmem>>, vector<1x96x32xf32>
    %33 = vector.shape_cast %32 : vector<1x96x32xf32> to vector<96x32xf32>
    %cst_18 = arith.constant dense<0.000000e+00> : vector<96x16xf32>
    %34 = tpu.matmul %33, %31, %cst_18 {dimension_numbers = #tpu.dot_dimension_numbers<[1], [0], [0], [1], [0, 0, 1, 1], [], []>} : vector<96x32xf32>, vector<32x16xf32>, vector<96x16xf32> -> vector<96x16xf32>
    %c0_19 = arith.constant 0 : index
    %c0_20 = arith.constant 0 : index
    %c0_21 = arith.constant 0 : index
    %35 = vector.load %arg6[%c0_19, %c0_20, %c0_21] : memref<2x96x1xf32, #tpu.memory_space<vmem>>, vector<1x96x1xf32>
    %36 = vector.shape_cast %35 : vector<1x96x1xf32> to vector<96x1xf32>
    %37 = vector.broadcast %36 : vector<96x1xf32> to vector<96x16xf32>
    %38 = arith.addf %34, %37 : vector<96x16xf32>
    %c0_22 = arith.constant 0 : index
    %c0_23 = arith.constant 0 : index
    %c0_24 = arith.constant 0 : index
    %39 = vector.load %arg7[%c0_22, %c0_23, %c0_24] : memref<2x32x32xf32, #tpu.memory_space<vmem>>, vector<1x32x32xf32>
    %40 = vector.shape_cast %39 : vector<1x32x32xf32> to vector<32x32xf32>
    %cst_25 = arith.constant 0.000000e+00 : f32
    %41 = vector.broadcast %cst_25 : f32 to vector<16x32xf32>
    %42 = vector.extract_strided_slice %38 {offsets = [0, 0], sizes = [16, 16], strides = [1, 1]} : vector<96x16xf32> to vector<16x16xf32>
    %43 = tpu.transpose %42, [1, 0] : vector<16x16xf32> -> vector<16x16xf32>
    %44 = vector.extract_strided_slice %38 {offsets = [32, 0], sizes = [16, 16], strides = [1, 1]} : vector<96x16xf32> to vector<16x16xf32>
    %45 = vector.extract_strided_slice %38 {offsets = [64, 0], sizes = [16, 16], strides = [1, 1]} : vector<96x16xf32> to vector<16x16xf32>
    %46 = tpu.transpose %45, [1, 0] : vector<16x16xf32> -> vector<16x16xf32>
    %cst_26 = arith.constant dense<0.000000e+00> : vector<16x16xf32>
    %47 = tpu.matmul %43, %44, %cst_26 {dimension_numbers = #tpu.dot_dimension_numbers<[1], [0], [0], [1], [0, 0, 1, 1], [], []>} : vector<16x16xf32>, vector<16x16xf32>, vector<16x16xf32> -> vector<16x16xf32>
    %cst_27 = arith.constant 2.500000e-01 : f32
    %48 = vector.broadcast %cst_27 : f32 to vector<16x16xf32>
    %49 = arith.mulf %47, %48 : vector<16x16xf32>
    %50 = arith.addf %49, %30 : vector<16x16xf32>
    %cst_28 = arith.constant dense<0xFF800000> : vector<16xf32>
    %51 = vector.multi_reduction <maximumf>, %50, %cst_28 [1] : vector<16x16xf32> to vector<16xf32>
    %52 = vector.shape_cast %51 : vector<16xf32> to vector<16x1xf32>
    %53 = vector.broadcast %52 : vector<16x1xf32> to vector<16x16xf32>
    %54 = arith.subf %50, %53 : vector<16x16xf32>
    %55 = math.exp %54 : vector<16x16xf32>
    %cst_29 = arith.constant dense<0.000000e+00> : vector<16xf32>
    %56 = vector.multi_reduction <add>, %55, %cst_29 [1] : vector<16x16xf32> to vector<16xf32>
    %57 = vector.shape_cast %56 : vector<16xf32> to vector<16x1xf32>
    %58 = tpu.reciprocal %57 {approx = true} : vector<16x1xf32> -> vector<16x1xf32>
    %59 = vector.broadcast %58 : vector<16x1xf32> to vector<16x16xf32>
    %60 = arith.mulf %55, %59 : vector<16x16xf32>
    %cst_30 = arith.constant dense<0.000000e+00> : vector<16x16xf32>
    %61 = tpu.matmul %60, %46, %cst_30 {dimension_numbers = #tpu.dot_dimension_numbers<[1], [0], [0], [1], [0, 0, 1, 1], [], []>} : vector<16x16xf32>, vector<16x16xf32>, vector<16x16xf32> -> vector<16x16xf32>
    %62 = vector.extract_strided_slice %40 {offsets = [0, 0], sizes = [16, 32], strides = [1, 1]} : vector<32x32xf32> to vector<16x32xf32>
    %cst_31 = arith.constant dense<0.000000e+00> : vector<16x32xf32>
    %63 = tpu.matmul %61, %62, %cst_31 {dimension_numbers = #tpu.dot_dimension_numbers<[1], [0], [0], [1], [0, 0, 1, 1], [], []>} : vector<16x16xf32>, vector<16x32xf32>, vector<16x32xf32> -> vector<16x32xf32>
    %64 = arith.addf %41, %63 : vector<16x32xf32>
    %65 = vector.extract_strided_slice %38 {offsets = [16, 0], sizes = [16, 16], strides = [1, 1]} : vector<96x16xf32> to vector<16x16xf32>
    %66 = tpu.transpose %65, [1, 0] : vector<16x16xf32> -> vector<16x16xf32>
    %67 = vector.extract_strided_slice %38 {offsets = [48, 0], sizes = [16, 16], strides = [1, 1]} : vector<96x16xf32> to vector<16x16xf32>
    %68 = vector.extract_strided_slice %38 {offsets = [80, 0], sizes = [16, 16], strides = [1, 1]} : vector<96x16xf32> to vector<16x16xf32>
    %69 = tpu.transpose %68, [1, 0] : vector<16x16xf32> -> vector<16x16xf32>
    %cst_32 = arith.constant dense<0.000000e+00> : vector<16x16xf32>
    %70 = tpu.matmul %66, %67, %cst_32 {dimension_numbers = #tpu.dot_dimension_numbers<[1], [0], [0], [1], [0, 0, 1, 1], [], []>} : vector<16x16xf32>, vector<16x16xf32>, vector<16x16xf32> -> vector<16x16xf32>
    %cst_33 = arith.constant 2.500000e-01 : f32
    %71 = vector.broadcast %cst_33 : f32 to vector<16x16xf32>
    %72 = arith.mulf %70, %71 : vector<16x16xf32>
    %73 = arith.addf %72, %30 : vector<16x16xf32>
    %cst_34 = arith.constant dense<0xFF800000> : vector<16xf32>
    %74 = vector.multi_reduction <maximumf>, %73, %cst_34 [1] : vector<16x16xf32> to vector<16xf32>
    %75 = vector.shape_cast %74 : vector<16xf32> to vector<16x1xf32>
    %76 = vector.broadcast %75 : vector<16x1xf32> to vector<16x16xf32>
    %77 = arith.subf %73, %76 : vector<16x16xf32>
    %78 = math.exp %77 : vector<16x16xf32>
    %cst_35 = arith.constant dense<0.000000e+00> : vector<16xf32>
    %79 = vector.multi_reduction <add>, %78, %cst_35 [1] : vector<16x16xf32> to vector<16xf32>
    %80 = vector.shape_cast %79 : vector<16xf32> to vector<16x1xf32>
    %81 = tpu.reciprocal %80 {approx = true} : vector<16x1xf32> -> vector<16x1xf32>
    %82 = vector.broadcast %81 : vector<16x1xf32> to vector<16x16xf32>
    %83 = arith.mulf %78, %82 : vector<16x16xf32>
    %cst_36 = arith.constant dense<0.000000e+00> : vector<16x16xf32>
    %84 = tpu.matmul %83, %69, %cst_36 {dimension_numbers = #tpu.dot_dimension_numbers<[1], [0], [0], [1], [0, 0, 1, 1], [], []>} : vector<16x16xf32>, vector<16x16xf32>, vector<16x16xf32> -> vector<16x16xf32>
    %85 = vector.extract_strided_slice %40 {offsets = [16, 0], sizes = [16, 32], strides = [1, 1]} : vector<32x32xf32> to vector<16x32xf32>
    %cst_37 = arith.constant dense<0.000000e+00> : vector<16x32xf32>
    %86 = tpu.matmul %84, %85, %cst_37 {dimension_numbers = #tpu.dot_dimension_numbers<[1], [0], [0], [1], [0, 0, 1, 1], [], []>} : vector<16x16xf32>, vector<16x32xf32>, vector<16x32xf32> -> vector<16x32xf32>
    %87 = arith.addf %64, %86 : vector<16x32xf32>
    %c0_38 = arith.constant 0 : index
    %c0_39 = arith.constant 0 : index
    %c0_40 = arith.constant 0 : index
    %88 = vector.load %arg8[%c0_38, %c0_39, %c0_40] : memref<2x1x32xf32, #tpu.memory_space<vmem>>, vector<1x1x32xf32>
    %89 = vector.shape_cast %88 : vector<1x1x32xf32> to vector<1x32xf32>
    %90 = vector.broadcast %89 : vector<1x32xf32> to vector<16x32xf32>
    %91 = arith.addf %87, %90 : vector<16x32xf32>
    %92 = arith.addf %91, %22 : vector<16x32xf32>
    %c0_41 = arith.constant 0 : index
    %c0_42 = arith.constant 0 : index
    %c0_43 = arith.constant 0 : index
    %93 = vector.load %arg9[%c0_41, %c0_42, %c0_43] : memref<2x1x32xf32, #tpu.memory_space<vmem>>, vector<1x1x32xf32>
    %94 = vector.shape_cast %93 : vector<1x1x32xf32> to vector<1x32xf32>
    %c0_44 = arith.constant 0 : index
    %c0_45 = arith.constant 0 : index
    %c0_46 = arith.constant 0 : index
    %95 = vector.load %arg10[%c0_44, %c0_45, %c0_46] : memref<2x1x32xf32, #tpu.memory_space<vmem>>, vector<1x1x32xf32>
    %96 = vector.shape_cast %95 : vector<1x1x32xf32> to vector<1x32xf32>
    %cst_47 = arith.constant dense<0.000000e+00> : vector<16xf32>
    %97 = vector.multi_reduction <add>, %92, %cst_47 [1] : vector<16x32xf32> to vector<16xf32>
    %98 = vector.shape_cast %97 : vector<16xf32> to vector<16x1xf32>
    %cst_48 = arith.constant 3.200000e+01 : f32
    %99 = vector.broadcast %cst_48 : f32 to vector<16x1xf32>
    %100 = arith.divf %98, %99 : vector<16x1xf32>
    %101 = vector.broadcast %100 : vector<16x1xf32> to vector<16x32xf32>
    %102 = arith.subf %92, %101 : vector<16x32xf32>
    %103 = arith.mulf %102, %102 : vector<16x32xf32>
    %cst_49 = arith.constant dense<0.000000e+00> : vector<16xf32>
    %104 = vector.multi_reduction <add>, %103, %cst_49 [1] : vector<16x32xf32> to vector<16xf32>
    %105 = vector.shape_cast %104 : vector<16xf32> to vector<16x1xf32>
    %cst_50 = arith.constant 3.200000e+01 : f32
    %106 = vector.broadcast %cst_50 : f32 to vector<16x1xf32>
    %107 = arith.divf %105, %106 : vector<16x1xf32>
    %cst_51 = arith.constant 9.99999996E-13 : f32
    %108 = vector.broadcast %cst_51 : f32 to vector<16x1xf32>
    %109 = arith.addf %107, %108 : vector<16x1xf32>
    %110 = math.rsqrt %109 : vector<16x1xf32>
    %111 = vector.broadcast %110 : vector<16x1xf32> to vector<16x32xf32>
    %112 = arith.mulf %102, %111 : vector<16x32xf32>
    %113 = vector.broadcast %94 : vector<1x32xf32> to vector<16x32xf32>
    %114 = arith.mulf %112, %113 : vector<16x32xf32>
    %115 = vector.broadcast %96 : vector<1x32xf32> to vector<16x32xf32>
    %116 = arith.addf %114, %115 : vector<16x32xf32>
    %c0_52 = arith.constant 0 : index
    %c0_53 = arith.constant 0 : index
    %c0_54 = arith.constant 0 : index
    %117 = vector.load %arg11[%c0_52, %c0_53, %c0_54] : memref<2x32x64xf32, #tpu.memory_space<vmem>>, vector<1x32x64xf32>
    %118 = vector.shape_cast %117 : vector<1x32x64xf32> to vector<32x64xf32>
    %cst_55 = arith.constant dense<0.000000e+00> : vector<16x64xf32>
    %119 = tpu.matmul %116, %118, %cst_55 {dimension_numbers = #tpu.dot_dimension_numbers<[1], [0], [0], [1], [0, 0, 1, 1], [], []>} : vector<16x32xf32>, vector<32x64xf32>, vector<16x64xf32> -> vector<16x64xf32>
    %c0_56 = arith.constant 0 : index
    %c0_57 = arith.constant 0 : index
    %c0_58 = arith.constant 0 : index
    %120 = vector.load %arg12[%c0_56, %c0_57, %c0_58] : memref<2x1x64xf32, #tpu.memory_space<vmem>>, vector<1x1x64xf32>
    %121 = vector.shape_cast %120 : vector<1x1x64xf32> to vector<1x64xf32>
    %122 = vector.broadcast %121 : vector<1x64xf32> to vector<16x64xf32>
    %123 = arith.addf %119, %122 : vector<16x64xf32>
    %cst_59 = arith.constant 5.000000e-01 : f32
    %124 = vector.broadcast %cst_59 : f32 to vector<16x64xf32>
    %125 = arith.mulf %124, %123 : vector<16x64xf32>
    %cst_60 = arith.constant 0.707106769 : f32
    %126 = vector.broadcast %cst_60 : f32 to vector<16x64xf32>
    %127 = arith.mulf %123, %126 : vector<16x64xf32>
    %128 = math.erf %127 : vector<16x64xf32>
    %cst_61 = arith.constant 1.000000e+00 : f32
    %129 = vector.broadcast %cst_61 : f32 to vector<16x64xf32>
    %130 = arith.addf %129, %128 : vector<16x64xf32>
    %131 = arith.mulf %125, %130 : vector<16x64xf32>
    %c0_62 = arith.constant 0 : index
    %c0_63 = arith.constant 0 : index
    %c0_64 = arith.constant 0 : index
    %132 = vector.load %arg13[%c0_62, %c0_63, %c0_64] : memref<2x64x32xf32, #tpu.memory_space<vmem>>, vector<1x64x32xf32>
    %133 = vector.shape_cast %132 : vector<1x64x32xf32> to vector<64x32xf32>
    %cst_65 = arith.constant dense<0.000000e+00> : vector<16x32xf32>
    %134 = tpu.matmul %131, %133, %cst_65 {dimension_numbers = #tpu.dot_dimension_numbers<[1], [0], [0], [1], [0, 0, 1, 1], [], []>} : vector<16x64xf32>, vector<64x32xf32>, vector<16x32xf32> -> vector<16x32xf32>
    %c0_66 = arith.constant 0 : index
    %c0_67 = arith.constant 0 : index
    %c0_68 = arith.constant 0 : index
    %135 = vector.load %arg14[%c0_66, %c0_67, %c0_68] : memref<2x1x32xf32, #tpu.memory_space<vmem>>, vector<1x1x32xf32>
    %136 = vector.shape_cast %135 : vector<1x1x32xf32> to vector<1x32xf32>
    %137 = vector.broadcast %136 : vector<1x32xf32> to vector<16x32xf32>
    %138 = arith.addf %134, %137 : vector<16x32xf32>
    %139 = arith.addf %138, %116 : vector<16x32xf32>
    %c0_69 = arith.constant 0 : index
    %c0_70 = arith.constant 0 : index
    %c0_71 = arith.constant 0 : index
    %140 = vector.load %arg15[%c0_69, %c0_70, %c0_71] : memref<2x1x32xf32, #tpu.memory_space<vmem>>, vector<1x1x32xf32>
    %141 = vector.shape_cast %140 : vector<1x1x32xf32> to vector<1x32xf32>
    %c0_72 = arith.constant 0 : index
    %c0_73 = arith.constant 0 : index
    %c0_74 = arith.constant 0 : index
    %142 = vector.load %arg16[%c0_72, %c0_73, %c0_74] : memref<2x1x32xf32, #tpu.memory_space<vmem>>, vector<1x1x32xf32>
    %143 = vector.shape_cast %142 : vector<1x1x32xf32> to vector<1x32xf32>
    %cst_75 = arith.constant dense<0.000000e+00> : vector<16xf32>
    %144 = vector.multi_reduction <add>, %139, %cst_75 [1] : vector<16x32xf32> to vector<16xf32>
    %145 = vector.shape_cast %144 : vector<16xf32> to vector<16x1xf32>
    %cst_76 = arith.constant 3.200000e+01 : f32
    %146 = vector.broadcast %cst_76 : f32 to vector<16x1xf32>
    %147 = arith.divf %145, %146 : vector<16x1xf32>
    %148 = vector.broadcast %147 : vector<16x1xf32> to vector<16x32xf32>
    %149 = arith.subf %139, %148 : vector<16x32xf32>
    %150 = arith.mulf %149, %149 : vector<16x32xf32>
    %cst_77 = arith.constant dense<0.000000e+00> : vector<16xf32>
    %151 = vector.multi_reduction <add>, %150, %cst_77 [1] : vector<16x32xf32> to vector<16xf32>
    %152 = vector.shape_cast %151 : vector<16xf32> to vector<16x1xf32>
    %cst_78 = arith.constant 3.200000e+01 : f32
    %153 = vector.broadcast %cst_78 : f32 to vector<16x1xf32>
    %154 = arith.divf %152, %153 : vector<16x1xf32>
    %cst_79 = arith.constant 9.99999996E-13 : f32
    %155 = vector.broadcast %cst_79 : f32 to vector<16x1xf32>
    %156 = arith.addf %154, %155 : vector<16x1xf32>
    %157 = math.rsqrt %156 : vector<16x1xf32>
    %158 = vector.broadcast %157 : vector<16x1xf32> to vector<16x32xf32>
    %159 = arith.mulf %149, %158 : vector<16x32xf32>
    %160 = vector.broadcast %141 : vector<1x32xf32> to vector<16x32xf32>
    %161 = arith.mulf %159, %160 : vector<16x32xf32>
    %162 = vector.broadcast %143 : vector<1x32xf32> to vector<16x32xf32>
    %163 = arith.addf %161, %162 : vector<16x32xf32>
    %164 = tpu.transpose %163, [1, 0] : vector<16x32xf32> -> vector<32x16xf32>
    %c1 = arith.constant 1 : index
    %c0_80 = arith.constant 0 : index
    %c0_81 = arith.constant 0 : index
    %165 = vector.load %arg5[%c1, %c0_80, %c0_81] : memref<2x96x32xf32, #tpu.memory_space<vmem>>, vector<1x96x32xf32>
    %166 = vector.shape_cast %165 : vector<1x96x32xf32> to vector<96x32xf32>
    %cst_82 = arith.constant dense<0.000000e+00> : vector<96x16xf32>
    %167 = tpu.matmul %166, %164, %cst_82 {dimension_numbers = #tpu.dot_dimension_numbers<[1], [0], [0], [1], [0, 0, 1, 1], [], []>} : vector<96x32xf32>, vector<32x16xf32>, vector<96x16xf32> -> vector<96x16xf32>
    %c1_83 = arith.constant 1 : index
    %c0_84 = arith.constant 0 : index
    %c0_85 = arith.constant 0 : index
    %168 = vector.load %arg6[%c1_83, %c0_84, %c0_85] : memref<2x96x1xf32, #tpu.memory_space<vmem>>, vector<1x96x1xf32>
    %169 = vector.shape_cast %168 : vector<1x96x1xf32> to vector<96x1xf32>
    %170 = vector.broadcast %169 : vector<96x1xf32> to vector<96x16xf32>
    %171 = arith.addf %167, %170 : vector<96x16xf32>
    %c1_86 = arith.constant 1 : index
    %c0_87 = arith.constant 0 : index
    %c0_88 = arith.constant 0 : index
    %172 = vector.load %arg7[%c1_86, %c0_87, %c0_88] : memref<2x32x32xf32, #tpu.memory_space<vmem>>, vector<1x32x32xf32>
    %173 = vector.shape_cast %172 : vector<1x32x32xf32> to vector<32x32xf32>
    %cst_89 = arith.constant 0.000000e+00 : f32
    %174 = vector.broadcast %cst_89 : f32 to vector<16x32xf32>
    %175 = vector.extract_strided_slice %171 {offsets = [0, 0], sizes = [16, 16], strides = [1, 1]} : vector<96x16xf32> to vector<16x16xf32>
    %176 = tpu.transpose %175, [1, 0] : vector<16x16xf32> -> vector<16x16xf32>
    %177 = vector.extract_strided_slice %171 {offsets = [32, 0], sizes = [16, 16], strides = [1, 1]} : vector<96x16xf32> to vector<16x16xf32>
    %178 = vector.extract_strided_slice %171 {offsets = [64, 0], sizes = [16, 16], strides = [1, 1]} : vector<96x16xf32> to vector<16x16xf32>
    %179 = tpu.transpose %178, [1, 0] : vector<16x16xf32> -> vector<16x16xf32>
    %cst_90 = arith.constant dense<0.000000e+00> : vector<16x16xf32>
    %180 = tpu.matmul %176, %177, %cst_90 {dimension_numbers = #tpu.dot_dimension_numbers<[1], [0], [0], [1], [0, 0, 1, 1], [], []>} : vector<16x16xf32>, vector<16x16xf32>, vector<16x16xf32> -> vector<16x16xf32>
    %cst_91 = arith.constant 2.500000e-01 : f32
    %181 = vector.broadcast %cst_91 : f32 to vector<16x16xf32>
    %182 = arith.mulf %180, %181 : vector<16x16xf32>
    %183 = arith.addf %182, %30 : vector<16x16xf32>
    %cst_92 = arith.constant dense<0xFF800000> : vector<16xf32>
    %184 = vector.multi_reduction <maximumf>, %183, %cst_92 [1] : vector<16x16xf32> to vector<16xf32>
    %185 = vector.shape_cast %184 : vector<16xf32> to vector<16x1xf32>
    %186 = vector.broadcast %185 : vector<16x1xf32> to vector<16x16xf32>
    %187 = arith.subf %183, %186 : vector<16x16xf32>
    %188 = math.exp %187 : vector<16x16xf32>
    %cst_93 = arith.constant dense<0.000000e+00> : vector<16xf32>
    %189 = vector.multi_reduction <add>, %188, %cst_93 [1] : vector<16x16xf32> to vector<16xf32>
    %190 = vector.shape_cast %189 : vector<16xf32> to vector<16x1xf32>
    %191 = tpu.reciprocal %190 {approx = true} : vector<16x1xf32> -> vector<16x1xf32>
    %192 = vector.broadcast %191 : vector<16x1xf32> to vector<16x16xf32>
    %193 = arith.mulf %188, %192 : vector<16x16xf32>
    %cst_94 = arith.constant dense<0.000000e+00> : vector<16x16xf32>
    %194 = tpu.matmul %193, %179, %cst_94 {dimension_numbers = #tpu.dot_dimension_numbers<[1], [0], [0], [1], [0, 0, 1, 1], [], []>} : vector<16x16xf32>, vector<16x16xf32>, vector<16x16xf32> -> vector<16x16xf32>
    %195 = vector.extract_strided_slice %173 {offsets = [0, 0], sizes = [16, 32], strides = [1, 1]} : vector<32x32xf32> to vector<16x32xf32>
    %cst_95 = arith.constant dense<0.000000e+00> : vector<16x32xf32>
    %196 = tpu.matmul %194, %195, %cst_95 {dimension_numbers = #tpu.dot_dimension_numbers<[1], [0], [0], [1], [0, 0, 1, 1], [], []>} : vector<16x16xf32>, vector<16x32xf32>, vector<16x32xf32> -> vector<16x32xf32>
    %197 = arith.addf %174, %196 : vector<16x32xf32>
    %198 = vector.extract_strided_slice %171 {offsets = [16, 0], sizes = [16, 16], strides = [1, 1]} : vector<96x16xf32> to vector<16x16xf32>
    %199 = tpu.transpose %198, [1, 0] : vector<16x16xf32> -> vector<16x16xf32>
    %200 = vector.extract_strided_slice %171 {offsets = [48, 0], sizes = [16, 16], strides = [1, 1]} : vector<96x16xf32> to vector<16x16xf32>
    %201 = vector.extract_strided_slice %171 {offsets = [80, 0], sizes = [16, 16], strides = [1, 1]} : vector<96x16xf32> to vector<16x16xf32>
    %202 = tpu.transpose %201, [1, 0] : vector<16x16xf32> -> vector<16x16xf32>
    %cst_96 = arith.constant dense<0.000000e+00> : vector<16x16xf32>
    %203 = tpu.matmul %199, %200, %cst_96 {dimension_numbers = #tpu.dot_dimension_numbers<[1], [0], [0], [1], [0, 0, 1, 1], [], []>} : vector<16x16xf32>, vector<16x16xf32>, vector<16x16xf32> -> vector<16x16xf32>
    %cst_97 = arith.constant 2.500000e-01 : f32
    %204 = vector.broadcast %cst_97 : f32 to vector<16x16xf32>
    %205 = arith.mulf %203, %204 : vector<16x16xf32>
    %206 = arith.addf %205, %30 : vector<16x16xf32>
    %cst_98 = arith.constant dense<0xFF800000> : vector<16xf32>
    %207 = vector.multi_reduction <maximumf>, %206, %cst_98 [1] : vector<16x16xf32> to vector<16xf32>
    %208 = vector.shape_cast %207 : vector<16xf32> to vector<16x1xf32>
    %209 = vector.broadcast %208 : vector<16x1xf32> to vector<16x16xf32>
    %210 = arith.subf %206, %209 : vector<16x16xf32>
    %211 = math.exp %210 : vector<16x16xf32>
    %cst_99 = arith.constant dense<0.000000e+00> : vector<16xf32>
    %212 = vector.multi_reduction <add>, %211, %cst_99 [1] : vector<16x16xf32> to vector<16xf32>
    %213 = vector.shape_cast %212 : vector<16xf32> to vector<16x1xf32>
    %214 = tpu.reciprocal %213 {approx = true} : vector<16x1xf32> -> vector<16x1xf32>
    %215 = vector.broadcast %214 : vector<16x1xf32> to vector<16x16xf32>
    %216 = arith.mulf %211, %215 : vector<16x16xf32>
    %cst_100 = arith.constant dense<0.000000e+00> : vector<16x16xf32>
    %217 = tpu.matmul %216, %202, %cst_100 {dimension_numbers = #tpu.dot_dimension_numbers<[1], [0], [0], [1], [0, 0, 1, 1], [], []>} : vector<16x16xf32>, vector<16x16xf32>, vector<16x16xf32> -> vector<16x16xf32>
    %218 = vector.extract_strided_slice %173 {offsets = [16, 0], sizes = [16, 32], strides = [1, 1]} : vector<32x32xf32> to vector<16x32xf32>
    %cst_101 = arith.constant dense<0.000000e+00> : vector<16x32xf32>
    %219 = tpu.matmul %217, %218, %cst_101 {dimension_numbers = #tpu.dot_dimension_numbers<[1], [0], [0], [1], [0, 0, 1, 1], [], []>} : vector<16x16xf32>, vector<16x32xf32>, vector<16x32xf32> -> vector<16x32xf32>
    %220 = arith.addf %197, %219 : vector<16x32xf32>
    %c1_102 = arith.constant 1 : index
    %c0_103 = arith.constant 0 : index
    %c0_104 = arith.constant 0 : index
    %221 = vector.load %arg8[%c1_102, %c0_103, %c0_104] : memref<2x1x32xf32, #tpu.memory_space<vmem>>, vector<1x1x32xf32>
    %222 = vector.shape_cast %221 : vector<1x1x32xf32> to vector<1x32xf32>
    %223 = vector.broadcast %222 : vector<1x32xf32> to vector<16x32xf32>
    %224 = arith.addf %220, %223 : vector<16x32xf32>
    %225 = arith.addf %224, %163 : vector<16x32xf32>
    %c1_105 = arith.constant 1 : index
    %c0_106 = arith.constant 0 : index
    %c0_107 = arith.constant 0 : index
    %226 = vector.load %arg9[%c1_105, %c0_106, %c0_107] : memref<2x1x32xf32, #tpu.memory_space<vmem>>, vector<1x1x32xf32>
    %227 = vector.shape_cast %226 : vector<1x1x32xf32> to vector<1x32xf32>
    %c1_108 = arith.constant 1 : index
    %c0_109 = arith.constant 0 : index
    %c0_110 = arith.constant 0 : index
    %228 = vector.load %arg10[%c1_108, %c0_109, %c0_110] : memref<2x1x32xf32, #tpu.memory_space<vmem>>, vector<1x1x32xf32>
    %229 = vector.shape_cast %228 : vector<1x1x32xf32> to vector<1x32xf32>
    %cst_111 = arith.constant dense<0.000000e+00> : vector<16xf32>
    %230 = vector.multi_reduction <add>, %225, %cst_111 [1] : vector<16x32xf32> to vector<16xf32>
    %231 = vector.shape_cast %230 : vector<16xf32> to vector<16x1xf32>
    %cst_112 = arith.constant 3.200000e+01 : f32
    %232 = vector.broadcast %cst_112 : f32 to vector<16x1xf32>
    %233 = arith.divf %231, %232 : vector<16x1xf32>
    %234 = vector.broadcast %233 : vector<16x1xf32> to vector<16x32xf32>
    %235 = arith.subf %225, %234 : vector<16x32xf32>
    %236 = arith.mulf %235, %235 : vector<16x32xf32>
    %cst_113 = arith.constant dense<0.000000e+00> : vector<16xf32>
    %237 = vector.multi_reduction <add>, %236, %cst_113 [1] : vector<16x32xf32> to vector<16xf32>
    %238 = vector.shape_cast %237 : vector<16xf32> to vector<16x1xf32>
    %cst_114 = arith.constant 3.200000e+01 : f32
    %239 = vector.broadcast %cst_114 : f32 to vector<16x1xf32>
    %240 = arith.divf %238, %239 : vector<16x1xf32>
    %cst_115 = arith.constant 9.99999996E-13 : f32
    %241 = vector.broadcast %cst_115 : f32 to vector<16x1xf32>
    %242 = arith.addf %240, %241 : vector<16x1xf32>
    %243 = math.rsqrt %242 : vector<16x1xf32>
    %244 = vector.broadcast %243 : vector<16x1xf32> to vector<16x32xf32>
    %245 = arith.mulf %235, %244 : vector<16x32xf32>
    %246 = vector.broadcast %227 : vector<1x32xf32> to vector<16x32xf32>
    %247 = arith.mulf %245, %246 : vector<16x32xf32>
    %248 = vector.broadcast %229 : vector<1x32xf32> to vector<16x32xf32>
    %249 = arith.addf %247, %248 : vector<16x32xf32>
    %c1_116 = arith.constant 1 : index
    %c0_117 = arith.constant 0 : index
    %c0_118 = arith.constant 0 : index
    %250 = vector.load %arg11[%c1_116, %c0_117, %c0_118] : memref<2x32x64xf32, #tpu.memory_space<vmem>>, vector<1x32x64xf32>
    %251 = vector.shape_cast %250 : vector<1x32x64xf32> to vector<32x64xf32>
    %cst_119 = arith.constant dense<0.000000e+00> : vector<16x64xf32>
    %252 = tpu.matmul %249, %251, %cst_119 {dimension_numbers = #tpu.dot_dimension_numbers<[1], [0], [0], [1], [0, 0, 1, 1], [], []>} : vector<16x32xf32>, vector<32x64xf32>, vector<16x64xf32> -> vector<16x64xf32>
    %c1_120 = arith.constant 1 : index
    %c0_121 = arith.constant 0 : index
    %c0_122 = arith.constant 0 : index
    %253 = vector.load %arg12[%c1_120, %c0_121, %c0_122] : memref<2x1x64xf32, #tpu.memory_space<vmem>>, vector<1x1x64xf32>
    %254 = vector.shape_cast %253 : vector<1x1x64xf32> to vector<1x64xf32>
    %255 = vector.broadcast %254 : vector<1x64xf32> to vector<16x64xf32>
    %256 = arith.addf %252, %255 : vector<16x64xf32>
    %cst_123 = arith.constant 5.000000e-01 : f32
    %257 = vector.broadcast %cst_123 : f32 to vector<16x64xf32>
    %258 = arith.mulf %257, %256 : vector<16x64xf32>
    %cst_124 = arith.constant 0.707106769 : f32
    %259 = vector.broadcast %cst_124 : f32 to vector<16x64xf32>
    %260 = arith.mulf %256, %259 : vector<16x64xf32>
    %261 = math.erf %260 : vector<16x64xf32>
    %cst_125 = arith.constant 1.000000e+00 : f32
    %262 = vector.broadcast %cst_125 : f32 to vector<16x64xf32>
    %263 = arith.addf %262, %261 : vector<16x64xf32>
    %264 = arith.mulf %258, %263 : vector<16x64xf32>
    %c1_126 = arith.constant 1 : index
    %c0_127 = arith.constant 0 : index
    %c0_128 = arith.constant 0 : index
    %265 = vector.load %arg13[%c1_126, %c0_127, %c0_128] : memref<2x64x32xf32, #tpu.memory_space<vmem>>, vector<1x64x32xf32>
    %266 = vector.shape_cast %265 : vector<1x64x32xf32> to vector<64x32xf32>
    %cst_129 = arith.constant dense<0.000000e+00> : vector<16x32xf32>
    %267 = tpu.matmul %264, %266, %cst_129 {dimension_numbers = #tpu.dot_dimension_numbers<[1], [0], [0], [1], [0, 0, 1, 1], [], []>} : vector<16x64xf32>, vector<64x32xf32>, vector<16x32xf32> -> vector<16x32xf32>
    %c1_130 = arith.constant 1 : index
    %c0_131 = arith.constant 0 : index
    %c0_132 = arith.constant 0 : index
    %268 = vector.load %arg14[%c1_130, %c0_131, %c0_132] : memref<2x1x32xf32, #tpu.memory_space<vmem>>, vector<1x1x32xf32>
    %269 = vector.shape_cast %268 : vector<1x1x32xf32> to vector<1x32xf32>
    %270 = vector.broadcast %269 : vector<1x32xf32> to vector<16x32xf32>
    %271 = arith.addf %267, %270 : vector<16x32xf32>
    %272 = arith.addf %271, %249 : vector<16x32xf32>
    %c1_133 = arith.constant 1 : index
    %c0_134 = arith.constant 0 : index
    %c0_135 = arith.constant 0 : index
    %273 = vector.load %arg15[%c1_133, %c0_134, %c0_135] : memref<2x1x32xf32, #tpu.memory_space<vmem>>, vector<1x1x32xf32>
    %274 = vector.shape_cast %273 : vector<1x1x32xf32> to vector<1x32xf32>
    %c1_136 = arith.constant 1 : index
    %c0_137 = arith.constant 0 : index
    %c0_138 = arith.constant 0 : index
    %275 = vector.load %arg16[%c1_136, %c0_137, %c0_138] : memref<2x1x32xf32, #tpu.memory_space<vmem>>, vector<1x1x32xf32>
    %276 = vector.shape_cast %275 : vector<1x1x32xf32> to vector<1x32xf32>
    %cst_139 = arith.constant dense<0.000000e+00> : vector<16xf32>
    %277 = vector.multi_reduction <add>, %272, %cst_139 [1] : vector<16x32xf32> to vector<16xf32>
    %278 = vector.shape_cast %277 : vector<16xf32> to vector<16x1xf32>
    %cst_140 = arith.constant 3.200000e+01 : f32
    %279 = vector.broadcast %cst_140 : f32 to vector<16x1xf32>
    %280 = arith.divf %278, %279 : vector<16x1xf32>
    %281 = vector.broadcast %280 : vector<16x1xf32> to vector<16x32xf32>
    %282 = arith.subf %272, %281 : vector<16x32xf32>
    %283 = arith.mulf %282, %282 : vector<16x32xf32>
    %cst_141 = arith.constant dense<0.000000e+00> : vector<16xf32>
    %284 = vector.multi_reduction <add>, %283, %cst_141 [1] : vector<16x32xf32> to vector<16xf32>
    %285 = vector.shape_cast %284 : vector<16xf32> to vector<16x1xf32>
    %cst_142 = arith.constant 3.200000e+01 : f32
    %286 = vector.broadcast %cst_142 : f32 to vector<16x1xf32>
    %287 = arith.divf %285, %286 : vector<16x1xf32>
    %cst_143 = arith.constant 9.99999996E-13 : f32
    %288 = vector.broadcast %cst_143 : f32 to vector<16x1xf32>
    %289 = arith.addf %287, %288 : vector<16x1xf32>
    %290 = math.rsqrt %289 : vector<16x1xf32>
    %291 = vector.broadcast %290 : vector<16x1xf32> to vector<16x32xf32>
    %292 = arith.mulf %282, %291 : vector<16x32xf32>
    %293 = vector.broadcast %274 : vector<1x32xf32> to vector<16x32xf32>
    %294 = arith.mulf %292, %293 : vector<16x32xf32>
    %295 = vector.broadcast %276 : vector<1x32xf32> to vector<16x32xf32>
    %296 = arith.addf %294, %295 : vector<16x32xf32>
    %c0_144 = arith.constant 0 : index
    %c0_145 = arith.constant 0 : index
    %297 = vector.load %arg17[%c0_144, %c0_145] : memref<16x32xf32, #tpu.memory_space<vmem>>, vector<16x32xf32>
    tpu.vector_store %arg17[%c0_144, %c0_145], %296 {strides = array<i32>} : memref<16x32xf32, #tpu.memory_space<vmem>>, vector<16x32xf32>,
    return
  }
}

</mosaic_0001>

<llo_original>
// kernel: language_embedding_layer.1
$region0: #{language_embedding_layer.1}
  #allocation0 [shape = 'u32[]', space=smem, size = 0x4, offset = 0x4, fixed_abs, tag = 'smem constant byte address 0x4 - core index']
  #allocation1 [shape = 'u32[144,128]{1,0:T(1,128)}', space=vmem, size = 0x12000, scoped, tag = 'internal scratch']
  %s0 = inlined_call_operand.vmem [shape: f32[16,32], index: 0, kind: input, shape index: {}]
  %s1 = inlined_call_operand.vmem [shape: f32[16,1], index: 1, kind: input, shape index: {}]
  %s2 = inlined_call_operand.vmem [shape: f32[1,16], index: 2, kind: input, shape index: {}]
  %s3 = inlined_call_operand.vmem [shape: f32[1,32], index: 3, kind: input, shape index: {}]
  %s4 = inlined_call_operand.vmem [shape: f32[1,32], index: 4, kind: input, shape index: {}]
  %s5 = inlined_call_operand.vmem [shape: f32[2,96,32], index: 5, kind: input, shape index: {}]
  %s6 = inlined_call_operand.vmem [shape: f32[2,96,1], index: 6, kind: input, shape index: {}]
  %s7 = inlined_call_operand.vmem [shape: f32[2,32,32], index: 7, kind: input, shape index: {}]
  %s8 = inlined_call_operand.vmem [shape: f32[2,1,32], index: 8, kind: input, shape index: {}]
  %s9 = inlined_call_operand.vmem [shape: f32[2,1,32], index: 9, kind: input, shape index: {}]
  %s10 = inlined_call_operand.vmem [shape: f32[2,1,32], index: 10, kind: input, shape index: {}]
  %s11 = inlined_call_operand.vmem [shape: f32[2,32,64], index: 11, kind: input, shape index: {}]
  %s12 = inlined_call_operand.vmem [shape: f32[2,1,64], index: 12, kind: input, shape index: {}]
  %s13 = inlined_call_operand.vmem [shape: f32[2,64,32], index: 13, kind: input, shape index: {}]
  %s14 = inlined_call_operand.vmem [shape: f32[2,1,32], index: 14, kind: input, shape index: {}]
  %s15 = inlined_call_operand.vmem [shape: f32[2,1,32], index: 15, kind: input, shape index: {}]
  %s16 = inlined_call_operand.vmem [shape: f32[2,1,32], index: 16, kind: input, shape index: {}]
  %s17 = inlined_call_operand.vmem [shape: f32[16,32], index: 17, kind: output, shape index: {}]
  %s18 = sld [smem:[#allocation0]]
  $region78: #{language_embedding_layer.1} parent=0
    _
  %s20 = ssub.s32 1, %s18
  %s21 = scalar_select 0, %s20, %s18
  // Predicated region
  $region2: #{language_embedding_layer.1} parent=0 // pred_check
    _
  $region3: #{language_embedding_layer.1} parent=0 // pred_check_branch
    %23 = sbr.rel (0) target = $region5
  $region4: #{language_embedding_layer.1} parent=0 // pred_region
    _
  $region5: #{language_embedding_layer.1} parent=0 // pred_fallthru
    _
  // Predicated region
  $region6: #{language_embedding_layer.1} parent=0 // pred_check
    _
  $region7: #{language_embedding_layer.1} parent=0 // pred_check_branch
    %25 = sbr.rel (0) target = $region9
  $region8: #{language_embedding_layer.1} parent=0 // pred_region
    _
  $region9: #{language_embedding_layer.1} parent=0 // pred_fallthru
    _
  // Predicated region
  $region10: #{language_embedding_layer.1} parent=0 // pred_check
    _
  $region11: #{language_embedding_layer.1} parent=0 // pred_check_branch
    %27 = sbr.rel (0) target = $region13
  $region12: #{language_embedding_layer.1} parent=0 // pred_region
    _
  $region13: #{language_embedding_layer.1} parent=0 // pred_fallthru
    _
  // Predicated region
  $region14: #{language_embedding_layer.1} parent=0 // pred_check
    _
  $region15: #{language_embedding_layer.1} parent=0 // pred_check_branch
    %29 = sbr.rel (0) target = $region17
  $region16: #{language_embedding_layer.1} parent=0 // pred_region
    _
  $region17: #{language_embedding_layer.1} parent=0 // pred_fallthru
    _
  // Predicated region
  $region18: #{language_embedding_layer.1} parent=0 // pred_check
    _
  $region19: #{language_embedding_layer.1} parent=0 // pred_check_branch
    %31 = sbr.rel (0) target = $region21
  $region20: #{language_embedding_layer.1} parent=0 // pred_region
    _
  $region21: #{language_embedding_layer.1} parent=0 // pred_fallthru
    _
  // Predicated region
  $region22: #{language_embedding_layer.1} parent=0 // pred_check
    _
  $region23: #{language_embedding_layer.1} parent=0 // pred_check_branch
    %33 = sbr.rel (0) target = $region25
  $region24: #{language_embedding_layer.1} parent=0 // pred_region
    _
  $region25: #{language_embedding_layer.1} parent=0 // pred_fallthru
    _
  // Predicated region
  $region26: #{language_embedding_layer.1} parent=0 // pred_check
    _
  $region27: #{language_embedding_layer.1} parent=0 // pred_check_branch
    %35 = sbr.rel (0) target = $region29
  $region28: #{language_embedding_layer.1} parent=0 // pred_region
    _
  $region29: #{language_embedding_layer.1} parent=0 // pred_fallthru
    _
  // Predicated region
  $region30: #{language_embedding_layer.1} parent=0 // pred_check
    _
  $region31: #{language_embedding_layer.1} parent=0 // pred_check_branch
    %37 = sbr.rel (0) target = $region33
  $region32: #{language_embedding_layer.1} parent=0 // pred_region
    _
  $region33: #{language_embedding_layer.1} parent=0 // pred_fallthru
    _
  // Predicated region
  $region34: #{language_embedding_layer.1} parent=0 // pred_check
    _
  $region35: #{language_embedding_layer.1} parent=0 // pred_check_branch
    %39 = sbr.rel (0) target = $region37
  $region36: #{language_embedding_layer.1} parent=0 // pred_region
    _
  $region37: #{language_embedding_layer.1} parent=0 // pred_fallthru
    _
  // Predicated region
  $region38: #{language_embedding_layer.1} parent=0 // pred_check
    _
  $region39: #{language_embedding_layer.1} parent=0 // pred_check_branch
    %41 = sbr.rel (0) target = $region41
  $region40: #{language_embedding_layer.1} parent=0 // pred_region
    _
  $region41: #{language_embedding_layer.1} parent=0 // pred_fallthru
    _
  // Predicated region
  $region42: #{language_embedding_layer.1} parent=0 // pred_check
    _
  $region43: #{language_embedding_layer.1} parent=0 // pred_check_branch
    %43 = sbr.rel (0) target = $region45
  $region44: #{language_embedding_layer.1} parent=0 // pred_region
    _
  $region45: #{language_embedding_layer.1} parent=0 // pred_fallthru
    _
  // Predicated region
  $region46: #{language_embedding_layer.1} parent=0 // pred_check
    _
  $region47: #{language_embedding_layer.1} parent=0 // pred_check_branch
    %45 = sbr.rel (0) target = $region49
  $region48: #{language_embedding_layer.1} parent=0 // pred_region
    _
  $region49: #{language_embedding_layer.1} parent=0 // pred_fallthru
    _
  // Predicated region
  $region50: #{language_embedding_layer.1} parent=0 // pred_check
    _
  $region51: #{language_embedding_layer.1} parent=0 // pred_check_branch
    %47 = sbr.rel (0) target = $region53
  $region52: #{language_embedding_layer.1} parent=0 // pred_region
    _
  $region53: #{language_embedding_layer.1} parent=0 // pred_fallthru
    _
  // Predicated region
  $region54: #{language_embedding_layer.1} parent=0 // pred_check
    _
  $region55: #{language_embedding_layer.1} parent=0 // pred_check_branch
    %49 = sbr.rel (0) target = $region57
  $region56: #{language_embedding_layer.1} parent=0 // pred_region
    _
  $region57: #{language_embedding_layer.1} parent=0 // pred_fallthru
    _
  // Predicated region
  $region58: #{language_embedding_layer.1} parent=0 // pred_check
    _
  $region59: #{language_embedding_layer.1} parent=0 // pred_check_branch
    %51 = sbr.rel (0) target = $region61
  $region60: #{language_embedding_layer.1} parent=0 // pred_region
    _
  $region61: #{language_embedding_layer.1} parent=0 // pred_fallthru
    _
  // Predicated region
  $region62: #{language_embedding_layer.1} parent=0 // pred_check
    _
  $region63: #{language_embedding_layer.1} parent=0 // pred_check_branch
    %53 = sbr.rel (0) target = $region65
  $region64: #{language_embedding_layer.1} parent=0 // pred_region
    _
  $region65: #{language_embedding_layer.1} parent=0 // pred_fallthru
    _
  // Predicated region
  $region66: #{language_embedding_layer.1} parent=0 // pred_check
    _
  $region67: #{language_embedding_layer.1} parent=0 // pred_check_branch
    %55 = sbr.rel (0) target = $region69
  $region68: #{language_embedding_layer.1} parent=0 // pred_region
    _
  $region69: #{language_embedding_layer.1} parent=0 // pred_fallthru
    _
  %v56 = vld [vmem:[%s0] sm:$0xff]
  %v57 = vld [vmem:[%s0 + $0x8] sm:$0xff]
  %v58 = vld [vmem:[%s3] sm:$0x1]
  %v59 = vld [vmem:[%s4] sm:$0x1]
  %vm60 = vcmask 261120
  %v61 = vsel %vm60, %v56, 0.0
  %62 = vadd.xlane.f32.xlu0 %v61
  %v63 = vpop.xlane.xlu0 %62
  %v64 = vsel %vm60, %v57, 0.0
  %65 = vadd.xlane.f32.xlu0 %v64
  %v66 = vpop.xlane.xlu0 %65
  %v67 = vrcp.pop 32.0
  %v68 = vmul.f32 %v63, %v67
  %v69 = vmul.f32 %v66, %v67
  %v70 = vsub.f32 %v56, %v68
  %v71 = vsub.f32 %v57, %v69
  %v72 = vmul.f32 %v70, %v70
  %v73 = vmul.f32 %v71, %v71
  %v74 = vsel %vm60, %v72, 0.0
  %75 = vadd.xlane.f32.xlu0 %v74
  %v76 = vpop.xlane.xlu0 %75
  %v77 = vsel %vm60, %v73, 0.0
  %78 = vadd.xlane.f32.xlu0 %v77
  %v79 = vpop.xlane.xlu0 %78
  %v80 = vmul.f32 %v76, %v67
  %v81 = vmul.f32 %v79, %v67
  %v82 = vadd.f32 %v80, 1e-12
  %v83 = vadd.f32 %v81, 1e-12
  %v84 = vrsqrt.pop %v82
  %v85 = vrsqrt.pop %v83
  %v86 = vmul.f32 %v70, %v84
  %v87 = vmul.f32 %v71, %v85
  %v89 = vlaneseq
  %v90 = vshrl.u32 %v89, 7
  %v91 = vsub.s32 0, %v90
  %v92 = vrot.slane %v58, %v91
  %v94 = vmul.f32 %v86, %v92
  %v95 = vmul.f32 %v87, %v92
  %v97 = vlaneseq
  %v98 = vshrl.u32 %v97, 7
  %v99 = vsub.s32 0, %v98
  %v100 = vrot.slane %v59, %v99
  %v102 = vadd.f32 %v94, %v100
  %v103 = vadd.f32 %v95, %v100
  %v104 = vld [vmem:[%s1] sm:$0xff]
  %v105 = vld [vmem:[%s1 + $0x8] sm:$0xff]
  %v106 = vld [vmem:[%s2] sm:$0x1]
  %108 = vset.pattern.permute.xlu0 0
  %109 = vperm.xlu0 %108, %v104
  %v110 = vpop.permute.xlu0 %109
  %113 = vset.pattern.permute.xlu0 0
  %114 = vperm.xlu0 %113, %v105
  %v115 = vpop.permute.xlu0 %114
  %v118 = vlaneseq
  %v119 = vshrl.u32 %v118, 7
  %v120 = vsub.s32 0, %v119
  %v121 = vrot.slane %v106, %v120
  %vm123 = vcmp.eq.f32.partialorder %v110, %v121
  %vm124 = vcmp.eq.f32.partialorder %v115, %v121
  %v125 = vsel %vm123, 0.0, -10000.0
  %v126 = vsel %vm124, 0.0, -10000.0
  %v127 = vld [vmem:[%s5] sm:$0xff]
  %v128 = vld [vmem:[%s5 + $0x8] sm:$0xff]
  %v129 = vld [vmem:[%s5 + $0x10] sm:$0xff]
  %v130 = vld [vmem:[%s5 + $0x18] sm:$0xff]
  %v131 = vld [vmem:[%s5 + $0x20] sm:$0xff]
  %v132 = vld [vmem:[%s5 + $0x28] sm:$0xff]
  %v133 = vld [vmem:[%s5 + $0x30] sm:$0xff]
  %v134 = vld [vmem:[%s5 + $0x38] sm:$0xff]
  %v135 = vld [vmem:[%s5 + $0x40] sm:$0xff]
  %v136 = vld [vmem:[%s5 + $0x48] sm:$0xff]
  %v137 = vld [vmem:[%s5 + $0x50] sm:$0xff]
  %v138 = vld [vmem:[%s5 + $0x58] sm:$0xff]
  %v139 = vld [vmem:[%s6] sm:$0xff]
  %v140 = vld [vmem:[%s6 + $0x8] sm:$0xff]
  %v141 = vld [vmem:[%s6 + $0x10] sm:$0xff]
  %v142 = vld [vmem:[%s6 + $0x18] sm:$0xff]
  %v143 = vld [vmem:[%s6 + $0x20] sm:$0xff]
  %v144 = vld [vmem:[%s6 + $0x28] sm:$0xff]
  %v145 = vld [vmem:[%s6 + $0x30] sm:$0xff]
  %v146 = vld [vmem:[%s6 + $0x38] sm:$0xff]
  %v147 = vld [vmem:[%s6 + $0x40] sm:$0xff]
  %v148 = vld [vmem:[%s6 + $0x48] sm:$0xff]
  %v149 = vld [vmem:[%s6 + $0x50] sm:$0xff]
  %v150 = vld [vmem:[%s6 + $0x58] sm:$0xff]
  %152 = vset.pattern.permute.xlu0 0
  %153 = vperm.xlu0 %152, %v139
  %v154 = vpop.permute.xlu0 %153
  %157 = vset.pattern.permute.xlu0 0
  %158 = vperm.xlu0 %157, %v140
  %v159 = vpop.permute.xlu0 %158
  %162 = vset.pattern.permute.xlu0 0
  %163 = vperm.xlu0 %162, %v141
  %v164 = vpop.permute.xlu0 %163
  %167 = vset.pattern.permute.xlu0 0
  %168 = vperm.xlu0 %167, %v142
  %v169 = vpop.permute.xlu0 %168
  %172 = vset.pattern.permute.xlu0 0
  %173 = vperm.xlu0 %172, %v143
  %v174 = vpop.permute.xlu0 %173
  %177 = vset.pattern.permute.xlu0 0
  %178 = vperm.xlu0 %177, %v144
  %v179 = vpop.permute.xlu0 %178
  %182 = vset.pattern.permute.xlu0 0
  %183 = vperm.xlu0 %182, %v145
  %v184 = vpop.permute.xlu0 %183
  %187 = vset.pattern.permute.xlu0 0
  %188 = vperm.xlu0 %187, %v146
  %v189 = vpop.permute.xlu0 %188
  %192 = vset.pattern.permute.xlu0 0
  %193 = vperm.xlu0 %192, %v147
  %v194 = vpop.permute.xlu0 %193
  %197 = vset.pattern.permute.xlu0 0
  %198 = vperm.xlu0 %197, %v148
  %v199 = vpop.permute.xlu0 %198
  %202 = vset.pattern.permute.xlu0 0
  %203 = vperm.xlu0 %202, %v149
  %v204 = vpop.permute.xlu0 %203
  %207 = vset.pattern.permute.xlu0 0
  %208 = vperm.xlu0 %207, %v150
  %v209 = vpop.permute.xlu0 %208
  %v212 = vsel %vm60, %v127, 0
  %v215 = vsel %vm60, %v128, 0
  %v218 = vsel %vm60, %v129, 0
  %v221 = vsel %vm60, %v130, 0
  %v224 = vsel %vm60, %v131, 0
  %v227 = vsel %vm60, %v132, 0
  %v230 = vsel %vm60, %v133, 0
  %v233 = vsel %vm60, %v134, 0
  %v236 = vsel %vm60, %v135, 0
  %v239 = vsel %vm60, %v136, 0
  %v242 = vsel %vm60, %v137, 0
  %v245 = vsel %vm60, %v138, 0
  %v248 = vsel %vm60, %v102, 0
  %v251 = vsel %vm60, %v103, 0
  %253 = vmatprep.subr.mxu0 0.0
  %254 = vmatpush1.xpose.msra.mxu0 0.0
  %255 = vmatprep.subr.mxu0 0.0
  %256 = vmatpush1.xpose.msra.mxu0 0.0
  %257 = vmatprep.subr.mxu0 0.0
  %258 = vmatpush1.xpose.msra.mxu0 0.0
  %259 = vmatprep.subr.mxu0 0.0
  %260 = vmatpush1.xpose.msra.mxu0 0.0
  %261 = vmatprep.subr.mxu0 0.0
  %262 = vmatpush1.xpose.msra.mxu0 0.0
  %263 = vmatprep.subr.mxu0 0.0
  %264 = vmatpush1.xpose.msra.mxu0 0.0
  %265 = vmatprep.subr.mxu0 0.0
  %266 = vmatpush1.xpose.msra.mxu0 0.0
  %267 = vmatprep.subr.mxu0 0.0
  %268 = vmatpush1.xpose.msra.mxu0 0.0
  %269 = vmatprep.subr.mxu0 0.0
  %270 = vmatpush1.xpose.msra.mxu0 0.0
  %271 = vmatprep.subr.mxu0 0.0
  %272 = vmatpush1.xpose.msra.mxu0 0.0
  %273 = vmatprep.subr.mxu0 0.0
  %274 = vmatpush1.xpose.msra.mxu0 0.0
  %275 = vmatprep.subr.mxu0 0.0
  %276 = vmatpush1.xpose.msra.mxu0 0.0
  %277 = vmatprep.subr.mxu0 0.0
  %278 = vmatpush1.xpose.msra.mxu0 0.0
  %279 = vmatprep.subr.mxu0 0.0
  %280 = vmatpush1.xpose.msra.mxu0 0.0
  %281 = vmatprep.subr.mxu0 0.0
  %282 = vmatpush1.xpose.msra.mxu0 %v251
  %283 = vmatprep.subr.mxu0 0.0
  %284 = vmatpush1.xpose.msra.mxu0 %v248
  %285 = vmatprep.subr.mxu0 0.0
  %286 = vmatpush2.xpose.msra.mxu0 0.0
  %287 = vmatprep.subr.mxu0 0.0
  %288 = vmatpush2.xpose.msra.mxu0 0.0
  %289 = vmatprep.subr.mxu0 0.0
  %290 = vmatpush2.xpose.msra.mxu0 0.0
  %291 = vmatprep.subr.mxu0 0.0
  %292 = vmatpush2.xpose.msra.mxu0 0.0
  %293 = vmatprep.subr.mxu0 0.0
  %294 = vmatpush2.xpose.msra.mxu0 0.0
  %295 = vmatprep.subr.mxu0 0.0
  %296 = vmatpush2.xpose.msra.mxu0 0.0
  %297 = vmatprep.subr.mxu0 0.0
  %298 = vmatpush2.xpose.msra.mxu0 0.0
  %299 = vmatprep.subr.mxu0 0.0
  %300 = vmatpush2.xpose.msra.mxu0 0.0
  %301 = vmatprep.subr.mxu0 0.0
  %302 = vmatpush2.xpose.msra.mxu0 0.0
  %303 = vmatprep.subr.mxu0 0.0
  %304 = vmatpush2.xpose.msra.mxu0 0.0
  %305 = vmatprep.subr.mxu0 0.0
  %306 = vmatpush2.xpose.msra.mxu0 0.0
  %307 = vmatprep.subr.mxu0 0.0
  %308 = vmatpush2.xpose.msra.mxu0 0.0
  %309 = vmatprep.subr.mxu0 0.0
  %310 = vmatpush2.xpose.msra.mxu0 0.0
  %311 = vmatprep.subr.mxu0 0.0
  %312 = vmatpush2.xpose.msra.mxu0 0.0
  %313 = vmatprep.subr.mxu0 0.0
  %314 = vmatpush2.xpose.msra.mxu0 0.0
  %315 = vmatprep.subr.mxu0 0.0
  %316 = vmatpush2.xpose.msra.mxu0 0.0
  %317 = vmatprep.mubr.f32.mxu0 0.0
  %318 = vmatmul.mubr.f32.gmra.mxu0 %v212
  %v319 = vpop.f32.mrf.mxu0
  %v320 = vadd.f32 %v154, %v319
  %v321 = vpop.f32.mrf.mxu0
  %322 = vmatprep.mubr.f32.mxu0 0.0
  %323 = vmatmul.mubr.f32.gmra.mxu0 %v215
  %v324 = vpop.f32.mrf.mxu0
  %v325 = vadd.f32 %v159, %v324
  %v326 = vpop.f32.mrf.mxu0
  %327 = vmatprep.mubr.f32.mxu0 0.0
  %328 = vmatmul.mubr.f32.gmra.mxu0 %v218
  %v329 = vpop.f32.mrf.mxu0
  %v330 = vadd.f32 %v164, %v329
  %v331 = vpop.f32.mrf.mxu0
  %332 = vmatprep.mubr.f32.mxu0 0.0
  %333 = vmatmul.mubr.f32.gmra.mxu0 %v221
  %v334 = vpop.f32.mrf.mxu0
  %v335 = vadd.f32 %v169, %v334
  %v336 = vpop.f32.mrf.mxu0
  %337 = vmatprep.mubr.f32.mxu0 0.0
  %338 = vmatmul.mubr.f32.gmra.mxu0 %v224
  %v339 = vpop.f32.mrf.mxu0
  %v340 = vadd.f32 %v174, %v339
  %v341 = vpop.f32.mrf.mxu0
  %342 = vmatprep.mubr.f32.mxu0 0.0
  %343 = vmatmul.mubr.f32.gmra.mxu0 %v227
  %v344 = vpop.f32.mrf.mxu0
  %v345 = vadd.f32 %v179, %v344
  %v346 = vpop.f32.mrf.mxu0
  %347 = vmatprep.mubr.f32.mxu0 0.0
  %348 = vmatmul.mubr.f32.gmra.mxu0 %v230
  %v349 = vpop.f32.mrf.mxu0
  %v350 = vadd.f32 %v184, %v349
  %v351 = vpop.f32.mrf.mxu0
  %352 = vmatprep.mubr.f32.mxu0 0.0
  %353 = vmatmul.mubr.f32.gmra.mxu0 %v233
  %v354 = vpop.f32.mrf.mxu0
  %v355 = vadd.f32 %v189, %v354
  %v356 = vpop.f32.mrf.mxu0
  %357 = vmatprep.mubr.f32.mxu0 0.0
  %358 = vmatmul.mubr.f32.gmra.mxu0 %v236
  %v359 = vpop.f32.mrf.mxu0
  %v360 = vadd.f32 %v194, %v359
  %v361 = vpop.f32.mrf.mxu0
  %362 = vmatprep.mubr.f32.mxu0 0.0
  %363 = vmatmul.mubr.f32.gmra.mxu0 %v239
  %v364 = vpop.f32.mrf.mxu0
  %v365 = vadd.f32 %v199, %v364
  %v366 = vpop.f32.mrf.mxu0
  %367 = vmatprep.mubr.f32.mxu0 0.0
  %368 = vmatmul.mubr.f32.gmra.mxu0 %v242
  %v369 = vpop.f32.mrf.mxu0
  %v370 = vadd.f32 %v204, %v369
  %v371 = vpop.f32.mrf.mxu0
  %372 = vmatprep.mubr.f32.mxu0 0.0
  %373 = vmatmul.mubr.f32.gmra.mxu0 %v245
  %v374 = vpop.f32.mrf.mxu0
  %v375 = vadd.f32 %v209, %v374
  %v376 = vpop.f32.mrf.mxu0
  %377 = vdwg.mxu0
  %v378 = vld [vmem:[%s7] sm:$0xff]
  %v379 = vld [vmem:[%s7 + $0x8] sm:$0xff]
  %v380 = vld [vmem:[%s7 + $0x10] sm:$0xff]
  %v381 = vld [vmem:[%s7 + $0x18] sm:$0xff]
  %382 = vxpose.xlu0.b32.start [1/16] %v320, 128
  %383 = vxpose.xlu0.b32.cont [2/16] %v325, 128
  %384 = vxpose.xlu0.b32.cont [3/16] 0.0, 128
  %385 = vxpose.xlu0.b32.cont [4/16] 0.0, 128
  %386 = vxpose.xlu0.b32.cont [5/16] 0.0, 128
  %387 = vxpose.xlu0.b32.cont [6/16] 0.0, 128
  %388 = vxpose.xlu0.b32.cont [7/16] 0.0, 128
  %389 = vxpose.xlu0.b32.cont [8/16] 0.0, 128
  %390 = vxpose.xlu0.b32.cont [9/16] 0.0, 128
  %391 = vxpose.xlu0.b32.cont [10/16] 0.0, 128
  %392 = vxpose.xlu0.b32.cont [11/16] 0.0, 128
  %393 = vxpose.xlu0.b32.cont [12/16] 0.0, 128
  %394 = vxpose.xlu0.b32.cont [13/16] 0.0, 128
  %395 = vxpose.xlu0.b32.cont [14/16] 0.0, 128
  %396 = vxpose.xlu0.b32.cont [15/16] 0.0, 128
  %397 = vxpose.xlu0.b32.end [16/16] 0.0, 128
  %v398 = vpop.trf.xlu0
  %v399 = vpop.trf.xlu0
  %v400 = vpop.trf.xlu0
  %v401 = vpop.trf.xlu0
  %v402 = vpop.trf.xlu0
  %v403 = vpop.trf.xlu0
  %v404 = vpop.trf.xlu0
  %v405 = vpop.trf.xlu0
  %v406 = vpop.trf.xlu0
  %v407 = vpop.trf.xlu0
  %v408 = vpop.trf.xlu0
  %v409 = vpop.trf.xlu0
  %v410 = vpop.trf.xlu0
  %v411 = vpop.trf.xlu0
  %v412 = vpop.trf.xlu0
  %v413 = vpop.trf.xlu0
  %vm414 = vcmask 130048
  %v416 = vsel %vm414, %v398, 0
  %v419 = vsel %vm414, %v399, 0
  %421 = vmatprep.subr.mxu0 0.0
  %422 = vmatpush1.msra.mxu0 0.0
  %423 = vmatprep.subr.mxu0 0.0
  %424 = vmatpush1.msra.mxu0 0.0
  %425 = vmatprep.subr.mxu0 0.0
  %426 = vmatpush1.msra.mxu0 0.0
  %427 = vmatprep.subr.mxu0 0.0
  %428 = vmatpush1.msra.mxu0 0.0
  %429 = vmatprep.subr.mxu0 0.0
  %430 = vmatpush1.msra.mxu0 0.0
  %431 = vmatprep.subr.mxu0 0.0
  %432 = vmatpush1.msra.mxu0 0.0
  %433 = vmatprep.subr.mxu0 0.0
  %434 = vmatpush1.msra.mxu0 0.0
  %435 = vmatprep.subr.mxu0 0.0
  %436 = vmatpush1.msra.mxu0 0.0
  %437 = vmatprep.subr.mxu0 0.0
  %438 = vmatpush1.msra.mxu0 0.0
  %439 = vmatprep.subr.mxu0 0.0
  %440 = vmatpush1.msra.mxu0 0.0
  %441 = vmatprep.subr.mxu0 0.0
  %442 = vmatpush1.msra.mxu0 0.0
  %443 = vmatprep.subr.mxu0 0.0
  %444 = vmatpush1.msra.mxu0 0.0
  %445 = vmatprep.subr.mxu0 0.0
  %446 = vmatpush1.msra.mxu0 0.0
  %447 = vmatprep.subr.mxu0 0.0
  %448 = vmatpush1.msra.mxu0 0.0
  %449 = vmatprep.subr.mxu0 0.0
  %450 = vmatpush1.msra.mxu0 %v345
  %451 = vmatprep.subr.mxu0 0.0
  %452 = vmatpush1.msra.mxu0 %v340
  %453 = vmatprep.subr.mxu0 0.0
  %454 = vmatpush2.msra.mxu0 0.0
  %455 = vmatprep.subr.mxu0 0.0
  %456 = vmatpush2.msra.mxu0 0.0
  %457 = vmatprep.subr.mxu0 0.0
  %458 = vmatpush2.msra.mxu0 0.0
  %459 = vmatprep.subr.mxu0 0.0
  %460 = vmatpush2.msra.mxu0 0.0
  %461 = vmatprep.subr.mxu0 0.0
  %462 = vmatpush2.msra.mxu0 0.0
  %463 = vmatprep.subr.mxu0 0.0
  %464 = vmatpush2.msra.mxu0 0.0
  %465 = vmatprep.subr.mxu0 0.0
  %466 = vmatpush2.msra.mxu0 0.0
  %467 = vmatprep.subr.mxu0 0.0
  %468 = vmatpush2.msra.mxu0 0.0
  %469 = vmatprep.subr.mxu0 0.0
  %470 = vmatpush2.msra.mxu0 0.0
  %471 = vmatprep.subr.mxu0 0.0
  %472 = vmatpush2.msra.mxu0 0.0
  %473 = vmatprep.subr.mxu0 0.0
  %474 = vmatpush2.msra.mxu0 0.0
  %475 = vmatprep.subr.mxu0 0.0
  %476 = vmatpush2.msra.mxu0 0.0
  %477 = vmatprep.subr.mxu0 0.0
  %478 = vmatpush2.msra.mxu0 0.0
  %479 = vmatprep.subr.mxu0 0.0
  %480 = vmatpush2.msra.mxu0 0.0
  %481 = vmatprep.subr.mxu0 0.0
  %482 = vmatpush2.msra.mxu0 0.0
  %483 = vmatprep.subr.mxu0 0.0
  %484 = vmatpush2.msra.mxu0 0.0
  %485 = vmatprep.mubr.f32.mxu0 0.0
  %486 = vmatmul.mubr.f32.gmra.mxu0 %v416
  %v487 = vpop.f32.mrf.mxu0
  %v488 = vadd.f32 0.0, %v487
  %v489 = vpop.f32.mrf.mxu0
  %490 = vmatprep.mubr.f32.mxu0 0.0
  %491 = vmatmul.mubr.f32.gmra.mxu0 %v419
  %v492 = vpop.f32.mrf.mxu0
  %v493 = vadd.f32 0.0, %v492
  %v494 = vpop.f32.mrf.mxu0
  %495 = vdwg.mxu0
  %v496 = vmul.f32 %v488, 0.25
  %v497 = vmul.f32 %v493, 0.25
  %v498 = vadd.f32 %v496, %v125
  %v499 = vadd.f32 %v497, %v126
  %v500 = vsel %vm414, %v498, -inf
  %501 = vmax.xlane.f32.xlu0 %v500
  %v502 = vpop.xlane.xlu0 %501
  %v503 = vsel %vm414, %v499, -inf
  %504 = vmax.xlane.f32.xlu0 %v503
  %v505 = vpop.xlane.xlu0 %504
  %v506 = vsub.f32 %v498, %v502
  %v507 = vsub.f32 %v499, %v505
  %v508 = vmul.f32 %v506, 1.442695
  %v509 = vpow.pop %v508
  %v510 = vmul.f32 %v507, 1.442695
  %v511 = vpow.pop %v510
  %v512 = vsel %vm414, %v509, 0.0
  %513 = vadd.xlane.f32.xlu0 %v512
  %v514 = vpop.xlane.xlu0 %513
  %v515 = vsel %vm414, %v511, 0.0
  %516 = vadd.xlane.f32.xlu0 %v515
  %v517 = vpop.xlane.xlu0 %516
  %v518 = vrcp.pop %v514
  %v519 = vrcp.pop %v517
  %v520 = vmul.f32 %v509, %v518
  %v521 = vmul.f32 %v511, %v519
  %v523 = vsel %vm414, %v520, 0
  %v526 = vsel %vm414, %v521, 0
  %v529 = vsel %vm414, %v360, 0
  %v532 = vsel %vm414, %v365, 0
  %534 = vmatprep.subr.mxu0 0.0
  %535 = vmatpush1.xpose.msra.mxu0 0.0
  %536 = vmatprep.subr.mxu0 0.0
  %537 = vmatpush1.xpose.msra.mxu0 0.0
  %538 = vmatprep.subr.mxu0 0.0
  %539 = vmatpush1.xpose.msra.mxu0 0.0
  %540 = vmatprep.subr.mxu0 0.0
  %541 = vmatpush1.xpose.msra.mxu0 0.0
  %542 = vmatprep.subr.mxu0 0.0
  %543 = vmatpush1.xpose.msra.mxu0 0.0
  %544 = vmatprep.subr.mxu0 0.0
  %545 = vmatpush1.xpose.msra.mxu0 0.0
  %546 = vmatprep.subr.mxu0 0.0
  %547 = vmatpush1.xpose.msra.mxu0 0.0
  %548 = vmatprep.subr.mxu0 0.0
  %549 = vmatpush1.xpose.msra.mxu0 0.0
  %550 = vmatprep.subr.mxu0 0.0
  %551 = vmatpush1.xpose.msra.mxu0 0.0
  %552 = vmatprep.subr.mxu0 0.0
  %553 = vmatpush1.xpose.msra.mxu0 0.0
  %554 = vmatprep.subr.mxu0 0.0
  %555 = vmatpush1.xpose.msra.mxu0 0.0
  %556 = vmatprep.subr.mxu0 0.0
  %557 = vmatpush1.xpose.msra.mxu0 0.0
  %558 = vmatprep.subr.mxu0 0.0
  %559 = vmatpush1.xpose.msra.mxu0 0.0
  %560 = vmatprep.subr.mxu0 0.0
  %561 = vmatpush1.xpose.msra.mxu0 0.0
  %562 = vmatprep.subr.mxu0 0.0
  %563 = vmatpush1.xpose.msra.mxu0 %v532
  %564 = vmatprep.subr.mxu0 0.0
  %565 = vmatpush1.xpose.msra.mxu0 %v529
  %566 = vmatprep.subr.mxu0 0.0
  %567 = vmatpush2.xpose.msra.mxu0 0.0
  %568 = vmatprep.subr.mxu0 0.0
  %569 = vmatpush2.xpose.msra.mxu0 0.0
  %570 = vmatprep.subr.mxu0 0.0
  %571 = vmatpush2.xpose.msra.mxu0 0.0
  %572 = vmatprep.subr.mxu0 0.0
  %573 = vmatpush2.xpose.msra.mxu0 0.0
  %574 = vmatprep.subr.mxu0 0.0
  %575 = vmatpush2.xpose.msra.mxu0 0.0
  %576 = vmatprep.subr.mxu0 0.0
  %577 = vmatpush2.xpose.msra.mxu0 0.0
  %578 = vmatprep.subr.mxu0 0.0
  %579 = vmatpush2.xpose.msra.mxu0 0.0
  %580 = vmatprep.subr.mxu0 0.0
  %581 = vmatpush2.xpose.msra.mxu0 0.0
  %582 = vmatprep.subr.mxu0 0.0
  %583 = vmatpush2.xpose.msra.mxu0 0.0
  %584 = vmatprep.subr.mxu0 0.0
  %585 = vmatpush2.xpose.msra.mxu0 0.0
  %586 = vmatprep.subr.mxu0 0.0
  %587 = vmatpush2.xpose.msra.mxu0 0.0
  %588 = vmatprep.subr.mxu0 0.0
  %589 = vmatpush2.xpose.msra.mxu0 0.0
  %590 = vmatprep.subr.mxu0 0.0
  %591 = vmatpush2.xpose.msra.mxu0 0.0
  %592 = vmatprep.subr.mxu0 0.0
  %593 = vmatpush2.xpose.msra.mxu0 0.0
  %594 = vmatprep.subr.mxu0 0.0
  %595 = vmatpush2.xpose.msra.mxu0 0.0
  %596 = vmatprep.subr.mxu0 0.0
  %597 = vmatpush2.xpose.msra.mxu0 0.0
  %598 = vmatprep.mubr.f32.mxu0 0.0
  %599 = vmatmul.mubr.f32.gmra.mxu0 %v523
  %v600 = vpop.f32.mrf.mxu0
  %v601 = vadd.f32 0.0, %v600
  %v602 = vpop.f32.mrf.mxu0
  %603 = vmatprep.mubr.f32.mxu0 0.0
  %604 = vmatmul.mubr.f32.gmra.mxu0 %v526
  %v605 = vpop.f32.mrf.mxu0
  %v606 = vadd.f32 0.0, %v605
  %v607 = vpop.f32.mrf.mxu0
  %608 = vdwg.mxu0
  %609 = vxpose.xlu0.b32.start [1/16] %v330, 128
  %610 = vxpose.xlu0.b32.cont [2/16] %v335, 128
  %611 = vxpose.xlu0.b32.cont [3/16] 0.0, 128
  %612 = vxpose.xlu0.b32.cont [4/16] 0.0, 128
  %613 = vxpose.xlu0.b32.cont [5/16] 0.0, 128
  %614 = vxpose.xlu0.b32.cont [6/16] 0.0, 128
  %615 = vxpose.xlu0.b32.cont [7/16] 0.0, 128
  %616 = vxpose.xlu0.b32.cont [8/16] 0.0, 128
  %617 = vxpose.xlu0.b32.cont [9/16] 0.0, 128
  %618 = vxpose.xlu0.b32.cont [10/16] 0.0, 128
  %619 = vxpose.xlu0.b32.cont [11/16] 0.0, 128
  %620 = vxpose.xlu0.b32.cont [12/16] 0.0, 128
  %621 = vxpose.xlu0.b32.cont [13/16] 0.0, 128
  %622 = vxpose.xlu0.b32.cont [14/16] 0.0, 128
  %623 = vxpose.xlu0.b32.cont [15/16] 0.0, 128
  %624 = vxpose.xlu0.b32.end [16/16] 0.0, 128
  %v625 = vpop.trf.xlu0
  %v626 = vpop.trf.xlu0
  %v627 = vpop.trf.xlu0
  %v628 = vpop.trf.xlu0
  %v629 = vpop.trf.xlu0
  %v630 = vpop.trf.xlu0
  %v631 = vpop.trf.xlu0
  %v632 = vpop.trf.xlu0
  %v633 = vpop.trf.xlu0
  %v634 = vpop.trf.xlu0
  %v635 = vpop.trf.xlu0
  %v636 = vpop.trf.xlu0
  %v637 = vpop.trf.xlu0
  %v638 = vpop.trf.xlu0
  %v639 = vpop.trf.xlu0
  %v640 = vpop.trf.xlu0
  %v642 = vsel %vm414, %v625, 0
  %v645 = vsel %vm414, %v626, 0
  %647 = vmatprep.subr.mxu0 0.0
  %648 = vmatpush1.msra.mxu0 0.0
  %649 = vmatprep.subr.mxu0 0.0
  %650 = vmatpush1.msra.mxu0 0.0
  %651 = vmatprep.subr.mxu0 0.0
  %652 = vmatpush1.msra.mxu0 0.0
  %653 = vmatprep.subr.mxu0 0.0
  %654 = vmatpush1.msra.mxu0 0.0
  %655 = vmatprep.subr.mxu0 0.0
  %656 = vmatpush1.msra.mxu0 0.0
  %657 = vmatprep.subr.mxu0 0.0
  %658 = vmatpush1.msra.mxu0 0.0
  %659 = vmatprep.subr.mxu0 0.0
  %660 = vmatpush1.msra.mxu0 0.0
  %661 = vmatprep.subr.mxu0 0.0
  %662 = vmatpush1.msra.mxu0 0.0
  %663 = vmatprep.subr.mxu0 0.0
  %664 = vmatpush1.msra.mxu0 0.0
  %665 = vmatprep.subr.mxu0 0.0
  %666 = vmatpush1.msra.mxu0 0.0
  %667 = vmatprep.subr.mxu0 0.0
  %668 = vmatpush1.msra.mxu0 0.0
  %669 = vmatprep.subr.mxu0 0.0
  %670 = vmatpush1.msra.mxu0 0.0
  %671 = vmatprep.subr.mxu0 0.0
  %672 = vmatpush1.msra.mxu0 0.0
  %673 = vmatprep.subr.mxu0 0.0
  %674 = vmatpush1.msra.mxu0 0.0
  %675 = vmatprep.subr.mxu0 0.0
  %676 = vmatpush1.msra.mxu0 %v355
  %677 = vmatprep.subr.mxu0 0.0
  %678 = vmatpush1.msra.mxu0 %v350
  %679 = vmatprep.subr.mxu0 0.0
  %680 = vmatpush2.msra.mxu0 0.0
  %681 = vmatprep.subr.mxu0 0.0
  %682 = vmatpush2.msra.mxu0 0.0
  %683 = vmatprep.subr.mxu0 0.0
  %684 = vmatpush2.msra.mxu0 0.0
  %685 = vmatprep.subr.mxu0 0.0
  %686 = vmatpush2.msra.mxu0 0.0
  %687 = vmatprep.subr.mxu0 0.0
  %688 = vmatpush2.msra.mxu0 0.0
  %689 = vmatprep.subr.mxu0 0.0
  %690 = vmatpush2.msra.mxu0 0.0
  %691 = vmatprep.subr.mxu0 0.0
  %692 = vmatpush2.msra.mxu0 0.0
  %693 = vmatprep.subr.mxu0 0.0
  %694 = vmatpush2.msra.mxu0 0.0
  %695 = vmatprep.subr.mxu0 0.0
  %696 = vmatpush2.msra.mxu0 0.0
  %697 = vmatprep.subr.mxu0 0.0
  %698 = vmatpush2.msra.mxu0 0.0
  %699 = vmatprep.subr.mxu0 0.0
  %700 = vmatpush2.msra.mxu0 0.0
  %701 = vmatprep.subr.mxu0 0.0
  %702 = vmatpush2.msra.mxu0 0.0
  %703 = vmatprep.subr.mxu0 0.0
  %704 = vmatpush2.msra.mxu0 0.0
  %705 = vmatprep.subr.mxu0 0.0
  %706 = vmatpush2.msra.mxu0 0.0
  %707 = vmatprep.subr.mxu0 0.0
  %708 = vmatpush2.msra.mxu0 0.0
  %709 = vmatprep.subr.mxu0 0.0
  %710 = vmatpush2.msra.mxu0 0.0
  %711 = vmatprep.mubr.f32.mxu0 0.0
  %712 = vmatmul.mubr.f32.gmra.mxu0 %v642
  %v713 = vpop.f32.mrf.mxu0
  %v714 = vadd.f32 0.0, %v713
  %v715 = vpop.f32.mrf.mxu0
  %716 = vmatprep.mubr.f32.mxu0 0.0
  %717 = vmatmul.mubr.f32.gmra.mxu0 %v645
  %v718 = vpop.f32.mrf.mxu0
  %v719 = vadd.f32 0.0, %v718
  %v720 = vpop.f32.mrf.mxu0
  %721 = vdwg.mxu0
  %v722 = vmul.f32 %v714, 0.25
  %v723 = vmul.f32 %v719, 0.25
  %v724 = vadd.f32 %v722, %v125
  %v725 = vadd.f32 %v723, %v126
  %v726 = vsel %vm414, %v724, -inf
  %727 = vmax.xlane.f32.xlu0 %v726
  %v728 = vpop.xlane.xlu0 %727
  %v729 = vsel %vm414, %v725, -inf
  %730 = vmax.xlane.f32.xlu0 %v729
  %v731 = vpop.xlane.xlu0 %730
  %v732 = vsub.f32 %v724, %v728
  %v733 = vsub.f32 %v725, %v731
  %v734 = vmul.f32 %v732, 1.442695
  %v735 = vpow.pop %v734
  %v736 = vmul.f32 %v733, 1.442695
  %v737 = vpow.pop %v736
  %v738 = vsel %vm414, %v735, 0.0
  %739 = vadd.xlane.f32.xlu0 %v738
  %v740 = vpop.xlane.xlu0 %739
  %v741 = vsel %vm414, %v737, 0.0
  %742 = vadd.xlane.f32.xlu0 %v741
  %v743 = vpop.xlane.xlu0 %742
  %v744 = vrcp.pop %v740
  %v745 = vrcp.pop %v743
  %v746 = vmul.f32 %v735, %v744
  %v747 = vmul.f32 %v737, %v745
  %v749 = vsel %vm414, %v746, 0
  %v752 = vsel %vm414, %v747, 0
  %v755 = vsel %vm414, %v370, 0
  %v758 = vsel %vm414, %v375, 0
  %760 = vmatprep.subr.mxu0 0.0
  %761 = vmatpush1.xpose.msra.mxu0 0.0
  %762 = vmatprep.subr.mxu0 0.0
  %763 = vmatpush1.xpose.msra.mxu0 0.0
  %764 = vmatprep.subr.mxu0 0.0
  %765 = vmatpush1.xpose.msra.mxu0 0.0
  %766 = vmatprep.subr.mxu0 0.0
  %767 = vmatpush1.xpose.msra.mxu0 0.0
  %768 = vmatprep.subr.mxu0 0.0
  %769 = vmatpush1.xpose.msra.mxu0 0.0
  %770 = vmatprep.subr.mxu0 0.0
  %771 = vmatpush1.xpose.msra.mxu0 0.0
  %772 = vmatprep.subr.mxu0 0.0
  %773 = vmatpush1.xpose.msra.mxu0 0.0
  %774 = vmatprep.subr.mxu0 0.0
  %775 = vmatpush1.xpose.msra.mxu0 0.0
  %776 = vmatprep.subr.mxu0 0.0
  %777 = vmatpush1.xpose.msra.mxu0 0.0
  %778 = vmatprep.subr.mxu0 0.0
  %779 = vmatpush1.xpose.msra.mxu0 0.0
  %780 = vmatprep.subr.mxu0 0.0
  %781 = vmatpush1.xpose.msra.mxu0 0.0
  %782 = vmatprep.subr.mxu0 0.0
  %783 = vmatpush1.xpose.msra.mxu0 0.0
  %784 = vmatprep.subr.mxu0 0.0
  %785 = vmatpush1.xpose.msra.mxu0 0.0
  %786 = vmatprep.subr.mxu0 0.0
  %787 = vmatpush1.xpose.msra.mxu0 0.0
  %788 = vmatprep.subr.mxu0 0.0
  %789 = vmatpush1.xpose.msra.mxu0 %v758
  %790 = vmatprep.subr.mxu0 0.0
  %791 = vmatpush1.xpose.msra.mxu0 %v755
  %792 = vmatprep.subr.mxu0 0.0
  %793 = vmatpush2.xpose.msra.mxu0 0.0
  %794 = vmatprep.subr.mxu0 0.0
  %795 = vmatpush2.xpose.msra.mxu0 0.0
  %796 = vmatprep.subr.mxu0 0.0
  %797 = vmatpush2.xpose.msra.mxu0 0.0
  %798 = vmatprep.subr.mxu0 0.0
  %799 = vmatpush2.xpose.msra.mxu0 0.0
  %800 = vmatprep.subr.mxu0 0.0
  %801 = vmatpush2.xpose.msra.mxu0 0.0
  %802 = vmatprep.subr.mxu0 0.0
  %803 = vmatpush2.xpose.msra.mxu0 0.0
  %804 = vmatprep.subr.mxu0 0.0
  %805 = vmatpush2.xpose.msra.mxu0 0.0
  %806 = vmatprep.subr.mxu0 0.0
  %807 = vmatpush2.xpose.msra.mxu0 0.0
  %808 = vmatprep.subr.mxu0 0.0
  %809 = vmatpush2.xpose.msra.mxu0 0.0
  %810 = vmatprep.subr.mxu0 0.0
  %811 = vmatpush2.xpose.msra.mxu0 0.0
  %812 = vmatprep.subr.mxu0 0.0
  %813 = vmatpush2.xpose.msra.mxu0 0.0
  %814 = vmatprep.subr.mxu0 0.0
  %815 = vmatpush2.xpose.msra.mxu0 0.0
  %816 = vmatprep.subr.mxu0 0.0
  %817 = vmatpush2.xpose.msra.mxu0 0.0
  %818 = vmatprep.subr.mxu0 0.0
  %819 = vmatpush2.xpose.msra.mxu0 0.0
  %820 = vmatprep.subr.mxu0 0.0
  %821 = vmatpush2.xpose.msra.mxu0 0.0
  %822 = vmatprep.subr.mxu0 0.0
  %823 = vmatpush2.xpose.msra.mxu0 0.0
  %824 = vmatprep.mubr.f32.mxu0 0.0
  %825 = vmatmul.mubr.f32.gmra.mxu0 %v749
  %v826 = vpop.f32.mrf.mxu0
  %v827 = vadd.f32 0.0, %v826
  %v828 = vpop.f32.mrf.mxu0
  %829 = vmatprep.mubr.f32.mxu0 0.0
  %830 = vmatmul.mubr.f32.gmra.mxu0 %v752
  %v831 = vpop.f32.mrf.mxu0
  %v832 = vadd.f32 0.0, %v831
  %v833 = vpop.f32.mrf.mxu0
  %834 = vdwg.mxu0
  %v836 = vsel %vm414, %v827, 0
  %v839 = vsel %vm414, %v832, 0
  %841 = vmatprep.subr.mxu0 0.0
  %842 = vmatpush1.msra.mxu0 0.0
  %843 = vmatprep.subr.mxu0 0.0
  %844 = vmatpush1.msra.mxu0 0.0
  %845 = vmatprep.subr.mxu0 0.0
  %846 = vmatpush1.msra.mxu0 0.0
  %847 = vmatprep.subr.mxu0 0.0
  %848 = vmatpush1.msra.mxu0 0.0
  %849 = vmatprep.subr.mxu0 0.0
  %850 = vmatpush1.msra.mxu0 0.0
  %851 = vmatprep.subr.mxu0 0.0
  %852 = vmatpush1.msra.mxu0 0.0
  %853 = vmatprep.subr.mxu0 0.0
  %854 = vmatpush1.msra.mxu0 0.0
  %855 = vmatprep.subr.mxu0 0.0
  %856 = vmatpush1.msra.mxu0 0.0
  %857 = vmatprep.subr.mxu0 0.0
  %858 = vmatpush1.msra.mxu0 0.0
  %859 = vmatprep.subr.mxu0 0.0
  %860 = vmatpush1.msra.mxu0 0.0
  %861 = vmatprep.subr.mxu0 0.0
  %862 = vmatpush1.msra.mxu0 0.0
  %863 = vmatprep.subr.mxu0 0.0
  %864 = vmatpush1.msra.mxu0 0.0
  %865 = vmatprep.subr.mxu0 0.0
  %866 = vmatpush1.msra.mxu0 0.0
  %867 = vmatprep.subr.mxu0 0.0
  %868 = vmatpush1.msra.mxu0 0.0
  %869 = vmatprep.subr.mxu0 0.0
  %870 = vmatpush1.msra.mxu0 %v381
  %871 = vmatprep.subr.mxu0 0.0
  %872 = vmatpush1.msra.mxu0 %v380
  %873 = vmatprep.subr.mxu0 0.0
  %874 = vmatpush2.msra.mxu0 0.0
  %875 = vmatprep.subr.mxu0 0.0
  %876 = vmatpush2.msra.mxu0 0.0
  %877 = vmatprep.subr.mxu0 0.0
  %878 = vmatpush2.msra.mxu0 0.0
  %879 = vmatprep.subr.mxu0 0.0
  %880 = vmatpush2.msra.mxu0 0.0
  %881 = vmatprep.subr.mxu0 0.0
  %882 = vmatpush2.msra.mxu0 0.0
  %883 = vmatprep.subr.mxu0 0.0
  %884 = vmatpush2.msra.mxu0 0.0
  %885 = vmatprep.subr.mxu0 0.0
  %886 = vmatpush2.msra.mxu0 0.0
  %887 = vmatprep.subr.mxu0 0.0
  %888 = vmatpush2.msra.mxu0 0.0
  %889 = vmatprep.subr.mxu0 0.0
  %890 = vmatpush2.msra.mxu0 0.0
  %891 = vmatprep.subr.mxu0 0.0
  %892 = vmatpush2.msra.mxu0 0.0
  %893 = vmatprep.subr.mxu0 0.0
  %894 = vmatpush2.msra.mxu0 0.0
  %895 = vmatprep.subr.mxu0 0.0
  %896 = vmatpush2.msra.mxu0 0.0
  %897 = vmatprep.subr.mxu0 0.0
  %898 = vmatpush2.msra.mxu0 0.0
  %899 = vmatprep.subr.mxu0 0.0
  %900 = vmatpush2.msra.mxu0 0.0
  %901 = vmatprep.subr.mxu0 0.0
  %902 = vmatpush2.msra.mxu0 0.0
  %903 = vmatprep.subr.mxu0 0.0
  %904 = vmatpush2.msra.mxu0 0.0
  %905 = vmatprep.mubr.f32.mxu0 0.0
  %906 = vmatmul.mubr.f32.gmra.mxu0 %v836
  %v907 = vpop.f32.mrf.mxu0
  %v908 = vadd.f32 0.0, %v907
  %v909 = vpop.f32.mrf.mxu0
  %910 = vmatprep.mubr.f32.mxu0 0.0
  %911 = vmatmul.mubr.f32.gmra.mxu0 %v839
  %v912 = vpop.f32.mrf.mxu0
  %v913 = vadd.f32 0.0, %v912
  %v914 = vpop.f32.mrf.mxu0
  %915 = vdwg.mxu0
  %v917 = vsel %vm414, %v601, 0
  %v920 = vsel %vm414, %v606, 0
  %922 = vmatprep.subr.mxu0 0.0
  %923 = vmatpush1.msra.mxu0 0.0
  %924 = vmatprep.subr.mxu0 0.0
  %925 = vmatpush1.msra.mxu0 0.0
  %926 = vmatprep.subr.mxu0 0.0
  %927 = vmatpush1.msra.mxu0 0.0
  %928 = vmatprep.subr.mxu0 0.0
  %929 = vmatpush1.msra.mxu0 0.0
  %930 = vmatprep.subr.mxu0 0.0
  %931 = vmatpush1.msra.mxu0 0.0
  %932 = vmatprep.subr.mxu0 0.0
  %933 = vmatpush1.msra.mxu0 0.0
  %934 = vmatprep.subr.mxu0 0.0
  %935 = vmatpush1.msra.mxu0 0.0
  %936 = vmatprep.subr.mxu0 0.0
  %937 = vmatpush1.msra.mxu0 0.0
  %938 = vmatprep.subr.mxu0 0.0
  %939 = vmatpush1.msra.mxu0 0.0
  %940 = vmatprep.subr.mxu0 0.0
  %941 = vmatpush1.msra.mxu0 0.0
  %942 = vmatprep.subr.mxu0 0.0
  %943 = vmatpush1.msra.mxu0 0.0
  %944 = vmatprep.subr.mxu0 0.0
  %945 = vmatpush1.msra.mxu0 0.0
  %946 = vmatprep.subr.mxu0 0.0
  %947 = vmatpush1.msra.mxu0 0.0
  %948 = vmatprep.subr.mxu0 0.0
  %949 = vmatpush1.msra.mxu0 0.0
  %950 = vmatprep.subr.mxu0 0.0
  %951 = vmatpush1.msra.mxu0 %v379
  %952 = vmatprep.subr.mxu0 0.0
  %953 = vmatpush1.msra.mxu0 %v378
  %954 = vmatprep.subr.mxu0 0.0
  %955 = vmatpush2.msra.mxu0 0.0
  %956 = vmatprep.subr.mxu0 0.0
  %957 = vmatpush2.msra.mxu0 0.0
  %958 = vmatprep.subr.mxu0 0.0
  %959 = vmatpush2.msra.mxu0 0.0
  %960 = vmatprep.subr.mxu0 0.0
  %961 = vmatpush2.msra.mxu0 0.0
  %962 = vmatprep.subr.mxu0 0.0
  %963 = vmatpush2.msra.mxu0 0.0
  %964 = vmatprep.subr.mxu0 0.0
  %965 = vmatpush2.msra.mxu0 0.0
  %966 = vmatprep.subr.mxu0 0.0
  %967 = vmatpush2.msra.mxu0 0.0
  %968 = vmatprep.subr.mxu0 0.0
  %969 = vmatpush2.msra.mxu0 0.0
  %970 = vmatprep.subr.mxu0 0.0
  %971 = vmatpush2.msra.mxu0 0.0
  %972 = vmatprep.subr.mxu0 0.0
  %973 = vmatpush2.msra.mxu0 0.0
  %974 = vmatprep.subr.mxu0 0.0
  %975 = vmatpush2.msra.mxu0 0.0
  %976 = vmatprep.subr.mxu0 0.0
  %977 = vmatpush2.msra.mxu0 0.0
  %978 = vmatprep.subr.mxu0 0.0
  %979 = vmatpush2.msra.mxu0 0.0
  %980 = vmatprep.subr.mxu0 0.0
  %981 = vmatpush2.msra.mxu0 0.0
  %982 = vmatprep.subr.mxu0 0.0
  %983 = vmatpush2.msra.mxu0 0.0
  %984 = vmatprep.subr.mxu0 0.0
  %985 = vmatpush2.msra.mxu0 0.0
  %986 = vmatprep.mubr.f32.mxu0 0.0
  %987 = vmatmul.mubr.f32.gmra.mxu0 %v917
  %v988 = vpop.f32.mrf.mxu0
  %v989 = vadd.f32 %v908, %v988
  %v990 = vpop.f32.mrf.mxu0
  %991 = vmatprep.mubr.f32.mxu0 0.0
  %992 = vmatmul.mubr.f32.gmra.mxu0 %v920
  %v993 = vpop.f32.mrf.mxu0
  %v994 = vadd.f32 %v913, %v993
  %v995 = vpop.f32.mrf.mxu0
  %996 = vdwg.mxu0
  %v997 = vld [vmem:[%s8] sm:$0x1]
  %v999 = vlaneseq
  %v1000 = vshrl.u32 %v999, 7
  %v1001 = vsub.s32 0, %v1000
  %v1002 = vrot.slane %v997, %v1001
  %v1004 = vadd.f32 %v989, %v1002
  %v1005 = vadd.f32 %v994, %v1002
  %v1006 = vadd.f32 %v1004, %v102
  %v1007 = vadd.f32 %v1005, %v103
  %v1008 = vld [vmem:[%s9] sm:$0x1]
  %v1009 = vld [vmem:[%s10] sm:$0x1]
  %v1010 = vsel %vm60, %v1006, 0.0
  %1011 = vadd.xlane.f32.xlu0 %v1010
  %v1012 = vpop.xlane.xlu0 %1011
  %v1013 = vsel %vm60, %v1007, 0.0
  %1014 = vadd.xlane.f32.xlu0 %v1013
  %v1015 = vpop.xlane.xlu0 %1014
  %v1016 = vmul.f32 %v1012, %v67
  %v1017 = vmul.f32 %v1015, %v67
  %v1018 = vsub.f32 %v1006, %v1016
  %v1019 = vsub.f32 %v1007, %v1017
  %v1020 = vmul.f32 %v1018, %v1018
  %v1021 = vmul.f32 %v1019, %v1019
  %v1022 = vsel %vm60, %v1020, 0.0
  %1023 = vadd.xlane.f32.xlu0 %v1022
  %v1024 = vpop.xlane.xlu0 %1023
  %v1025 = vsel %vm60, %v1021, 0.0
  %1026 = vadd.xlane.f32.xlu0 %v1025
  %v1027 = vpop.xlane.xlu0 %1026
  %v1028 = vmul.f32 %v1024, %v67
  %v1029 = vmul.f32 %v1027, %v67
  %v1030 = vadd.f32 %v1028, 1e-12
  %v1031 = vadd.f32 %v1029, 1e-12
  %v1032 = vrsqrt.pop %v1030
  %v1033 = vrsqrt.pop %v1031
  %v1034 = vmul.f32 %v1018, %v1032
  %v1035 = vmul.f32 %v1019, %v1033
  %v1037 = vlaneseq
  %v1038 = vshrl.u32 %v1037, 7
  %v1039 = vsub.s32 0, %v1038
  %v1040 = vrot.slane %v1008, %v1039
  %v1042 = vmul.f32 %v1034, %v1040
  %v1043 = vmul.f32 %v1035, %v1040
  %v1045 = vlaneseq
  %v1046 = vshrl.u32 %v1045, 7
  %v1047 = vsub.s32 0, %v1046
  %v1048 = vrot.slane %v1009, %v1047
  %v1050 = vadd.f32 %v1042, %v1048
  %v1051 = vadd.f32 %v1043, %v1048
  %v1052 = vld [vmem:[%s11] sm:$0xff]
  %v1053 = vld [vmem:[%s11 + $0x8] sm:$0xff]
  %v1054 = vld [vmem:[%s11 + $0x10] sm:$0xff]
  %v1055 = vld [vmem:[%s11 + $0x18] sm:$0xff]
  %v1056 = vld [vmem:[%s12] sm:$0x1]
  %v1058 = vlaneseq
  %v1059 = vshrl.u32 %v1058, 7
  %v1060 = vsub.s32 0, %v1059
  %v1061 = vrot.slane %v1056, %v1060
  %v1064 = vsel %vm60, %v1050, 0
  %v1067 = vsel %vm60, %v1051, 0
  %1069 = vmatprep.subr.mxu0 0.0
  %1070 = vmatpush1.msra.mxu0 0.0
  %1071 = vmatprep.subr.mxu0 0.0
  %1072 = vmatpush1.msra.mxu0 0.0
  %1073 = vmatprep.subr.mxu0 0.0
  %1074 = vmatpush1.msra.mxu0 0.0
  %1075 = vmatprep.subr.mxu0 0.0
  %1076 = vmatpush1.msra.mxu0 0.0
  %1077 = vmatprep.subr.mxu0 0.0
  %1078 = vmatpush1.msra.mxu0 0.0
  %1079 = vmatprep.subr.mxu0 0.0
  %1080 = vmatpush1.msra.mxu0 0.0
  %1081 = vmatprep.subr.mxu0 0.0
  %1082 = vmatpush1.msra.mxu0 0.0
  %1083 = vmatprep.subr.mxu0 0.0
  %1084 = vmatpush1.msra.mxu0 0.0
  %1085 = vmatprep.subr.mxu0 0.0
  %1086 = vmatpush1.msra.mxu0 0.0
  %1087 = vmatprep.subr.mxu0 0.0
  %1088 = vmatpush1.msra.mxu0 0.0
  %1089 = vmatprep.subr.mxu0 0.0
  %1090 = vmatpush1.msra.mxu0 0.0
  %1091 = vmatprep.subr.mxu0 0.0
  %1092 = vmatpush1.msra.mxu0 0.0
  %1093 = vmatprep.subr.mxu0 0.0
  %1094 = vmatpush1.msra.mxu0 %v1055
  %1095 = vmatprep.subr.mxu0 0.0
  %1096 = vmatpush1.msra.mxu0 %v1054
  %1097 = vmatprep.subr.mxu0 0.0
  %1098 = vmatpush1.msra.mxu0 %v1053
  %1099 = vmatprep.subr.mxu0 0.0
  %1100 = vmatpush1.msra.mxu0 %v1052
  %1101 = vmatprep.subr.mxu0 0.0
  %1102 = vmatpush2.msra.mxu0 0.0
  %1103 = vmatprep.subr.mxu0 0.0
  %1104 = vmatpush2.msra.mxu0 0.0
  %1105 = vmatprep.subr.mxu0 0.0
  %1106 = vmatpush2.msra.mxu0 0.0
  %1107 = vmatprep.subr.mxu0 0.0
  %1108 = vmatpush2.msra.mxu0 0.0
  %1109 = vmatprep.subr.mxu0 0.0
  %1110 = vmatpush2.msra.mxu0 0.0
  %1111 = vmatprep.subr.mxu0 0.0
  %1112 = vmatpush2.msra.mxu0 0.0
  %1113 = vmatprep.subr.mxu0 0.0
  %1114 = vmatpush2.msra.mxu0 0.0
  %1115 = vmatprep.subr.mxu0 0.0
  %1116 = vmatpush2.msra.mxu0 0.0
  %1117 = vmatprep.subr.mxu0 0.0
  %1118 = vmatpush2.msra.mxu0 0.0
  %1119 = vmatprep.subr.mxu0 0.0
  %1120 = vmatpush2.msra.mxu0 0.0
  %1121 = vmatprep.subr.mxu0 0.0
  %1122 = vmatpush2.msra.mxu0 0.0
  %1123 = vmatprep.subr.mxu0 0.0
  %1124 = vmatpush2.msra.mxu0 0.0
  %1125 = vmatprep.subr.mxu0 0.0
  %1126 = vmatpush2.msra.mxu0 0.0
  %1127 = vmatprep.subr.mxu0 0.0
  %1128 = vmatpush2.msra.mxu0 0.0
  %1129 = vmatprep.subr.mxu0 0.0
  %1130 = vmatpush2.msra.mxu0 0.0
  %1131 = vmatprep.subr.mxu0 0.0
  %1132 = vmatpush2.msra.mxu0 0.0
  %1133 = vmatprep.mubr.f32.mxu0 0.0
  %1134 = vmatmul.mubr.f32.gmra.mxu0 %v1064
  %v1135 = vpop.f32.mrf.mxu0
  %v1136 = vadd.f32 %v1061, %v1135
  %v1137 = vpop.f32.mrf.mxu0
  %1138 = vmatprep.mubr.f32.mxu0 0.0
  %1139 = vmatmul.mubr.f32.gmra.mxu0 %v1067
  %v1140 = vpop.f32.mrf.mxu0
  %v1141 = vadd.f32 %v1061, %v1140
  %v1142 = vpop.f32.mrf.mxu0
  %1143 = vdwg.mxu0
  %v1144 = vmul.f32 %v1136, 0.5
  %v1145 = vmul.f32 %v1141, 0.5
  %v1146 = vmul.f32 %v1136, 0.70710677
  %v1147 = vmul.f32 %v1141, 0.70710677
  %v1148 = verf.f32.pop %v1146
  %v1149 = verf.f32.pop %v1147
  %v1150 = vadd.f32 %v1148, 1.0
  %v1151 = vadd.f32 %v1149, 1.0
  %v1152 = vmul.f32 %v1144, %v1150
  %v1153 = vmul.f32 %v1145, %v1151
  %v1154 = vld [vmem:[%s13] sm:$0xff]
  %v1155 = vld [vmem:[%s13 + $0x8] sm:$0xff]
  %v1156 = vld [vmem:[%s13 + $0x10] sm:$0xff]
  %v1157 = vld [vmem:[%s13 + $0x18] sm:$0xff]
  %v1158 = vld [vmem:[%s13 + $0x20] sm:$0xff]
  %v1159 = vld [vmem:[%s13 + $0x28] sm:$0xff]
  %v1160 = vld [vmem:[%s13 + $0x30] sm:$0xff]
  %v1161 = vld [vmem:[%s13 + $0x38] sm:$0xff]
  %v1162 = vld [vmem:[%s14] sm:$0x1]
  %v1164 = vlaneseq
  %v1165 = vshrl.u32 %v1164, 7
  %v1166 = vsub.s32 0, %v1165
  %v1167 = vrot.slane %v1162, %v1166
  %vm1169 = vcmask 523264
  %v1171 = vsel %vm1169, %v1152, 0
  %v1174 = vsel %vm1169, %v1153, 0
  %1176 = vmatprep.subr.mxu0 0.0
  %1177 = vmatpush1.msra.mxu0 0.0
  %1178 = vmatprep.subr.mxu0 0.0
  %1179 = vmatpush1.msra.mxu0 0.0
  %1180 = vmatprep.subr.mxu0 0.0
  %1181 = vmatpush1.msra.mxu0 0.0
  %1182 = vmatprep.subr.mxu0 0.0
  %1183 = vmatpush1.msra.mxu0 0.0
  %1184 = vmatprep.subr.mxu0 0.0
  %1185 = vmatpush1.msra.mxu0 0.0
  %1186 = vmatprep.subr.mxu0 0.0
  %1187 = vmatpush1.msra.mxu0 0.0
  %1188 = vmatprep.subr.mxu0 0.0
  %1189 = vmatpush1.msra.mxu0 0.0
  %1190 = vmatprep.subr.mxu0 0.0
  %1191 = vmatpush1.msra.mxu0 0.0
  %1192 = vmatprep.subr.mxu0 0.0
  %1193 = vmatpush1.msra.mxu0 %v1161
  %1194 = vmatprep.subr.mxu0 0.0
  %1195 = vmatpush1.msra.mxu0 %v1160
  %1196 = vmatprep.subr.mxu0 0.0
  %1197 = vmatpush1.msra.mxu0 %v1159
  %1198 = vmatprep.subr.mxu0 0.0
  %1199 = vmatpush1.msra.mxu0 %v1158
  %1200 = vmatprep.subr.mxu0 0.0
  %1201 = vmatpush1.msra.mxu0 %v1157
  %1202 = vmatprep.subr.mxu0 0.0
  %1203 = vmatpush1.msra.mxu0 %v1156
  %1204 = vmatprep.subr.mxu0 0.0
  %1205 = vmatpush1.msra.mxu0 %v1155
  %1206 = vmatprep.subr.mxu0 0.0
  %1207 = vmatpush1.msra.mxu0 %v1154
  %1208 = vmatprep.subr.mxu0 0.0
  %1209 = vmatpush2.msra.mxu0 0.0
  %1210 = vmatprep.subr.mxu0 0.0
  %1211 = vmatpush2.msra.mxu0 0.0
  %1212 = vmatprep.subr.mxu0 0.0
  %1213 = vmatpush2.msra.mxu0 0.0
  %1214 = vmatprep.subr.mxu0 0.0
  %1215 = vmatpush2.msra.mxu0 0.0
  %1216 = vmatprep.subr.mxu0 0.0
  %1217 = vmatpush2.msra.mxu0 0.0
  %1218 = vmatprep.subr.mxu0 0.0
  %1219 = vmatpush2.msra.mxu0 0.0
  %1220 = vmatprep.subr.mxu0 0.0
  %1221 = vmatpush2.msra.mxu0 0.0
  %1222 = vmatprep.subr.mxu0 0.0
  %1223 = vmatpush2.msra.mxu0 0.0
  %1224 = vmatprep.subr.mxu0 0.0
  %1225 = vmatpush2.msra.mxu0 0.0
  %1226 = vmatprep.subr.mxu0 0.0
  %1227 = vmatpush2.msra.mxu0 0.0
  %1228 = vmatprep.subr.mxu0 0.0
  %1229 = vmatpush2.msra.mxu0 0.0
  %1230 = vmatprep.subr.mxu0 0.0
  %1231 = vmatpush2.msra.mxu0 0.0
  %1232 = vmatprep.subr.mxu0 0.0
  %1233 = vmatpush2.msra.mxu0 0.0
  %1234 = vmatprep.subr.mxu0 0.0
  %1235 = vmatpush2.msra.mxu0 0.0
  %1236 = vmatprep.subr.mxu0 0.0
  %1237 = vmatpush2.msra.mxu0 0.0
  %1238 = vmatprep.subr.mxu0 0.0
  %1239 = vmatpush2.msra.mxu0 0.0
  %1240 = vmatprep.mubr.f32.mxu0 0.0
  %1241 = vmatmul.mubr.f32.gmra.mxu0 %v1171
  %v1242 = vpop.f32.mrf.mxu0
  %v1243 = vadd.f32 %v1167, %v1242
  %v1244 = vpop.f32.mrf.mxu0
  %1245 = vmatprep.mubr.f32.mxu0 0.0
  %1246 = vmatmul.mubr.f32.gmra.mxu0 %v1174
  %v1247 = vpop.f32.mrf.mxu0
  %v1248 = vadd.f32 %v1167, %v1247
  %v1249 = vpop.f32.mrf.mxu0
  %1250 = vdwg.mxu0
  %v1251 = vadd.f32 %v1243, %v1050
  %v1252 = vadd.f32 %v1248, %v1051
  %v1253 = vld [vmem:[%s15] sm:$0x1]
  %v1254 = vld [vmem:[%s16] sm:$0x1]
  %v1255 = vsel %vm60, %v1251, 0.0
  %1256 = vadd.xlane.f32.xlu0 %v1255
  %v1257 = vpop.xlane.xlu0 %1256
  %v1258 = vsel %vm60, %v1252, 0.0
  %1259 = vadd.xlane.f32.xlu0 %v1258
  %v1260 = vpop.xlane.xlu0 %1259
  %v1261 = vmul.f32 %v1257, %v67
  %v1262 = vmul.f32 %v1260, %v67
  %v1263 = vsub.f32 %v1251, %v1261
  %v1264 = vsub.f32 %v1252, %v1262
  %v1265 = vmul.f32 %v1263, %v1263
  %v1266 = vmul.f32 %v1264, %v1264
  %v1267 = vsel %vm60, %v1265, 0.0
  %1268 = vadd.xlane.f32.xlu0 %v1267
  %v1269 = vpop.xlane.xlu0 %1268
  %v1270 = vsel %vm60, %v1266, 0.0
  %1271 = vadd.xlane.f32.xlu0 %v1270
  %v1272 = vpop.xlane.xlu0 %1271
  %v1273 = vmul.f32 %v1269, %v67
  %v1274 = vmul.f32 %v1272, %v67
  %v1275 = vadd.f32 %v1273, 1e-12
  %v1276 = vadd.f32 %v1274, 1e-12
  %v1277 = vrsqrt.pop %v1275
  %v1278 = vrsqrt.pop %v1276
  %v1279 = vmul.f32 %v1263, %v1277
  %v1280 = vmul.f32 %v1264, %v1278
  %v1282 = vlaneseq
  %v1283 = vshrl.u32 %v1282, 7
  %v1284 = vsub.s32 0, %v1283
  %v1285 = vrot.slane %v1253, %v1284
  %v1287 = vmul.f32 %v1279, %v1285
  %v1288 = vmul.f32 %v1280, %v1285
  %v1290 = vlaneseq
  %v1291 = vshrl.u32 %v1290, 7
  %v1292 = vsub.s32 0, %v1291
  %v1293 = vrot.slane %v1254, %v1292
  %v1295 = vadd.f32 %v1287, %v1293
  %v1296 = vadd.f32 %v1288, %v1293
  %s1297 = scalar_lea.vmem %s5, 96
  %v1298 = vld [vmem:[%s1297] sm:$0xff]
  %v1299 = vld [vmem:[%s1297 + $0x8] sm:$0xff]
  %v1300 = vld [vmem:[%s1297 + $0x10] sm:$0xff]
  %v1301 = vld [vmem:[%s1297 + $0x18] sm:$0xff]
  %v1302 = vld [vmem:[%s1297 + $0x20] sm:$0xff]
  %v1303 = vld [vmem:[%s1297 + $0x28] sm:$0xff]
  %v1304 = vld [vmem:[%s1297 + $0x30] sm:$0xff]
  %v1305 = vld [vmem:[%s1297 + $0x38] sm:$0xff]
  %v1306 = vld [vmem:[%s1297 + $0x40] sm:$0xff]
  %v1307 = vld [vmem:[%s1297 + $0x48] sm:$0xff]
  %v1308 = vld [vmem:[%s1297 + $0x50] sm:$0xff]
  %v1309 = vld [vmem:[%s1297 + $0x58] sm:$0xff]
  %s1310 = scalar_lea.vmem %s6, 96
  %v1311 = vld [vmem:[%s1310] sm:$0xff]
  %v1312 = vld [vmem:[%s1310 + $0x8] sm:$0xff]
  %v1313 = vld [vmem:[%s1310 + $0x10] sm:$0xff]
  %v1314 = vld [vmem:[%s1310 + $0x18] sm:$0xff]
  %v1315 = vld [vmem:[%s1310 + $0x20] sm:$0xff]
  %v1316 = vld [vmem:[%s1310 + $0x28] sm:$0xff]
  %v1317 = vld [vmem:[%s1310 + $0x30] sm:$0xff]
  %v1318 = vld [vmem:[%s1310 + $0x38] sm:$0xff]
  %v1319 = vld [vmem:[%s1310 + $0x40] sm:$0xff]
  %v1320 = vld [vmem:[%s1310 + $0x48] sm:$0xff]
  %v1321 = vld [vmem:[%s1310 + $0x50] sm:$0xff]
  %v1322 = vld [vmem:[%s1310 + $0x58] sm:$0xff]
  %1324 = vset.pattern.permute.xlu0 0
  %1325 = vperm.xlu0 %1324, %v1311
  %v1326 = vpop.permute.xlu0 %1325
  %1329 = vset.pattern.permute.xlu0 0
  %1330 = vperm.xlu0 %1329, %v1312
  %v1331 = vpop.permute.xlu0 %1330
  %1334 = vset.pattern.permute.xlu0 0
  %1335 = vperm.xlu0 %1334, %v1313
  %v1336 = vpop.permute.xlu0 %1335
  %1339 = vset.pattern.permute.xlu0 0
  %1340 = vperm.xlu0 %1339, %v1314
  %v1341 = vpop.permute.xlu0 %1340
  %1344 = vset.pattern.permute.xlu0 0
  %1345 = vperm.xlu0 %1344, %v1315
  %v1346 = vpop.permute.xlu0 %1345
  %1349 = vset.pattern.permute.xlu0 0
  %1350 = vperm.xlu0 %1349, %v1316
  %v1351 = vpop.permute.xlu0 %1350
  %1354 = vset.pattern.permute.xlu0 0
  %1355 = vperm.xlu0 %1354, %v1317
  %v1356 = vpop.permute.xlu0 %1355
  %1359 = vset.pattern.permute.xlu0 0
  %1360 = vperm.xlu0 %1359, %v1318
  %v1361 = vpop.permute.xlu0 %1360
  %1364 = vset.pattern.permute.xlu0 0
  %1365 = vperm.xlu0 %1364, %v1319
  %v1366 = vpop.permute.xlu0 %1365
  %1369 = vset.pattern.permute.xlu0 0
  %1370 = vperm.xlu0 %1369, %v1320
  %v1371 = vpop.permute.xlu0 %1370
  %1374 = vset.pattern.permute.xlu0 0
  %1375 = vperm.xlu0 %1374, %v1321
  %v1376 = vpop.permute.xlu0 %1375
  %1379 = vset.pattern.permute.xlu0 0
  %1380 = vperm.xlu0 %1379, %v1322
  %v1381 = vpop.permute.xlu0 %1380
  %v1384 = vsel %vm60, %v1298, 0
  %v1387 = vsel %vm60, %v1299, 0
  %v1390 = vsel %vm60, %v1300, 0
  %v1393 = vsel %vm60, %v1301, 0
  %v1396 = vsel %vm60, %v1302, 0
  %v1399 = vsel %vm60, %v1303, 0
  %v1402 = vsel %vm60, %v1304, 0
  %v1405 = vsel %vm60, %v1305, 0
  %v1408 = vsel %vm60, %v1306, 0
  %v1411 = vsel %vm60, %v1307, 0
  %v1414 = vsel %vm60, %v1308, 0
  %v1417 = vsel %vm60, %v1309, 0
  %v1420 = vsel %vm60, %v1295, 0
  %v1423 = vsel %vm60, %v1296, 0
  %1425 = vmatprep.subr.mxu0 0.0
  %1426 = vmatpush1.xpose.msra.mxu0 0.0
  %1427 = vmatprep.subr.mxu0 0.0
  %1428 = vmatpush1.xpose.msra.mxu0 0.0
  %1429 = vmatprep.subr.mxu0 0.0
  %1430 = vmatpush1.xpose.msra.mxu0 0.0
  %1431 = vmatprep.subr.mxu0 0.0
  %1432 = vmatpush1.xpose.msra.mxu0 0.0
  %1433 = vmatprep.subr.mxu0 0.0
  %1434 = vmatpush1.xpose.msra.mxu0 0.0
  %1435 = vmatprep.subr.mxu0 0.0
  %1436 = vmatpush1.xpose.msra.mxu0 0.0
  %1437 = vmatprep.subr.mxu0 0.0
  %1438 = vmatpush1.xpose.msra.mxu0 0.0
  %1439 = vmatprep.subr.mxu0 0.0
  %1440 = vmatpush1.xpose.msra.mxu0 0.0
  %1441 = vmatprep.subr.mxu0 0.0
  %1442 = vmatpush1.xpose.msra.mxu0 0.0
  %1443 = vmatprep.subr.mxu0 0.0
  %1444 = vmatpush1.xpose.msra.mxu0 0.0
  %1445 = vmatprep.subr.mxu0 0.0
  %1446 = vmatpush1.xpose.msra.mxu0 0.0
  %1447 = vmatprep.subr.mxu0 0.0
  %1448 = vmatpush1.xpose.msra.mxu0 0.0
  %1449 = vmatprep.subr.mxu0 0.0
  %1450 = vmatpush1.xpose.msra.mxu0 0.0
  %1451 = vmatprep.subr.mxu0 0.0
  %1452 = vmatpush1.xpose.msra.mxu0 0.0
  %1453 = vmatprep.subr.mxu0 0.0
  %1454 = vmatpush1.xpose.msra.mxu0 %v1423
  %1455 = vmatprep.subr.mxu0 0.0
  %1456 = vmatpush1.xpose.msra.mxu0 %v1420
  %1457 = vmatprep.subr.mxu0 0.0
  %1458 = vmatpush2.xpose.msra.mxu0 0.0
  %1459 = vmatprep.subr.mxu0 0.0
  %1460 = vmatpush2.xpose.msra.mxu0 0.0
  %1461 = vmatprep.subr.mxu0 0.0
  %1462 = vmatpush2.xpose.msra.mxu0 0.0
  %1463 = vmatprep.subr.mxu0 0.0
  %1464 = vmatpush2.xpose.msra.mxu0 0.0
  %1465 = vmatprep.subr.mxu0 0.0
  %1466 = vmatpush2.xpose.msra.mxu0 0.0
  %1467 = vmatprep.subr.mxu0 0.0
  %1468 = vmatpush2.xpose.msra.mxu0 0.0
  %1469 = vmatprep.subr.mxu0 0.0
  %1470 = vmatpush2.xpose.msra.mxu0 0.0
  %1471 = vmatprep.subr.mxu0 0.0
  %1472 = vmatpush2.xpose.msra.mxu0 0.0
  %1473 = vmatprep.subr.mxu0 0.0
  %1474 = vmatpush2.xpose.msra.mxu0 0.0
  %1475 = vmatprep.subr.mxu0 0.0
  %1476 = vmatpush2.xpose.msra.mxu0 0.0
  %1477 = vmatprep.subr.mxu0 0.0
  %1478 = vmatpush2.xpose.msra.mxu0 0.0
  %1479 = vmatprep.subr.mxu0 0.0
  %1480 = vmatpush2.xpose.msra.mxu0 0.0
  %1481 = vmatprep.subr.mxu0 0.0
  %1482 = vmatpush2.xpose.msra.mxu0 0.0
  %1483 = vmatprep.subr.mxu0 0.0
  %1484 = vmatpush2.xpose.msra.mxu0 0.0
  %1485 = vmatprep.subr.mxu0 0.0
  %1486 = vmatpush2.xpose.msra.mxu0 0.0
  %1487 = vmatprep.subr.mxu0 0.0
  %1488 = vmatpush2.xpose.msra.mxu0 0.0
  %1489 = vmatprep.mubr.f32.mxu0 0.0
  %1490 = vmatmul.mubr.f32.gmra.mxu0 %v1384
  %v1491 = vpop.f32.mrf.mxu0
  %v1492 = vadd.f32 %v1326, %v1491
  %v1493 = vpop.f32.mrf.mxu0
  %1494 = vmatprep.mubr.f32.mxu0 0.0
  %1495 = vmatmul.mubr.f32.gmra.mxu0 %v1387
  %v1496 = vpop.f32.mrf.mxu0
  %v1497 = vadd.f32 %v1331, %v1496
  %v1498 = vpop.f32.mrf.mxu0
  %1499 = vmatprep.mubr.f32.mxu0 0.0
  %1500 = vmatmul.mubr.f32.gmra.mxu0 %v1390
  %v1501 = vpop.f32.mrf.mxu0
  %v1502 = vadd.f32 %v1336, %v1501
  %v1503 = vpop.f32.mrf.mxu0
  %1504 = vmatprep.mubr.f32.mxu0 0.0
  %1505 = vmatmul.mubr.f32.gmra.mxu0 %v1393
  %v1506 = vpop.f32.mrf.mxu0
  %v1507 = vadd.f32 %v1341, %v1506
  %v1508 = vpop.f32.mrf.mxu0
  %1509 = vmatprep.mubr.f32.mxu0 0.0
  %1510 = vmatmul.mubr.f32.gmra.mxu0 %v1396
  %v1511 = vpop.f32.mrf.mxu0
  %v1512 = vadd.f32 %v1346, %v1511
  %v1513 = vpop.f32.mrf.mxu0
  %1514 = vmatprep.mubr.f32.mxu0 0.0
  %1515 = vmatmul.mubr.f32.gmra.mxu0 %v1399
  %v1516 = vpop.f32.mrf.mxu0
  %v1517 = vadd.f32 %v1351, %v1516
  %v1518 = vpop.f32.mrf.mxu0
  %1519 = vmatprep.mubr.f32.mxu0 0.0
  %1520 = vmatmul.mubr.f32.gmra.mxu0 %v1402
  %v1521 = vpop.f32.mrf.mxu0
  %v1522 = vadd.f32 %v1356, %v1521
  %v1523 = vpop.f32.mrf.mxu0
  %1524 = vmatprep.mubr.f32.mxu0 0.0
  %1525 = vmatmul.mubr.f32.gmra.mxu0 %v1405
  %v1526 = vpop.f32.mrf.mxu0
  %v1527 = vadd.f32 %v1361, %v1526
  %v1528 = vpop.f32.mrf.mxu0
  %1529 = vmatprep.mubr.f32.mxu0 0.0
  %1530 = vmatmul.mubr.f32.gmra.mxu0 %v1408
  %v1531 = vpop.f32.mrf.mxu0
  %v1532 = vadd.f32 %v1366, %v1531
  %v1533 = vpop.f32.mrf.mxu0
  %1534 = vmatprep.mubr.f32.mxu0 0.0
  %1535 = vmatmul.mubr.f32.gmra.mxu0 %v1411
  %v1536 = vpop.f32.mrf.mxu0
  %v1537 = vadd.f32 %v1371, %v1536
  %v1538 = vpop.f32.mrf.mxu0
  %1539 = vmatprep.mubr.f32.mxu0 0.0
  %1540 = vmatmul.mubr.f32.gmra.mxu0 %v1414
  %v1541 = vpop.f32.mrf.mxu0
  %v1542 = vadd.f32 %v1376, %v1541
  %v1543 = vpop.f32.mrf.mxu0
  %1544 = vmatprep.mubr.f32.mxu0 0.0
  %1545 = vmatmul.mubr.f32.gmra.mxu0 %v1417
  %v1546 = vpop.f32.mrf.mxu0
  %v1547 = vadd.f32 %v1381, %v1546
  %v1548 = vpop.f32.mrf.mxu0
  %1549 = vdwg.mxu0
  %s1550 = scalar_lea.vmem %s7, 32
  %v1551 = vld [vmem:[%s1550] sm:$0xff]
  %v1552 = vld [vmem:[%s1550 + $0x8] sm:$0xff]
  %v1553 = vld [vmem:[%s1550 + $0x10] sm:$0xff]
  %v1554 = vld [vmem:[%s1550 + $0x18] sm:$0xff]
  %1555 = vxpose.xlu0.b32.start [1/16] %v1492, 128
  %1556 = vxpose.xlu0.b32.cont [2/16] %v1497, 128
  %1557 = vxpose.xlu0.b32.cont [3/16] 0.0, 128
  %1558 = vxpose.xlu0.b32.cont [4/16] 0.0, 128
  %1559 = vxpose.xlu0.b32.cont [5/16] 0.0, 128
  %1560 = vxpose.xlu0.b32.cont [6/16] 0.0, 128
  %1561 = vxpose.xlu0.b32.cont [7/16] 0.0, 128
  %1562 = vxpose.xlu0.b32.cont [8/16] 0.0, 128
  %1563 = vxpose.xlu0.b32.cont [9/16] 0.0, 128
  %1564 = vxpose.xlu0.b32.cont [10/16] 0.0, 128
  %1565 = vxpose.xlu0.b32.cont [11/16] 0.0, 128
  %1566 = vxpose.xlu0.b32.cont [12/16] 0.0, 128
  %1567 = vxpose.xlu0.b32.cont [13/16] 0.0, 128
  %1568 = vxpose.xlu0.b32.cont [14/16] 0.0, 128
  %1569 = vxpose.xlu0.b32.cont [15/16] 0.0, 128
  %1570 = vxpose.xlu0.b32.end [16/16] 0.0, 128
  %v1571 = vpop.trf.xlu0
  %v1572 = vpop.trf.xlu0
  %v1573 = vpop.trf.xlu0
  %v1574 = vpop.trf.xlu0
  %v1575 = vpop.trf.xlu0
  %v1576 = vpop.trf.xlu0
  %v1577 = vpop.trf.xlu0
  %v1578 = vpop.trf.xlu0
  %v1579 = vpop.trf.xlu0
  %v1580 = vpop.trf.xlu0
  %v1581 = vpop.trf.xlu0
  %v1582 = vpop.trf.xlu0
  %v1583 = vpop.trf.xlu0
  %v1584 = vpop.trf.xlu0
  %v1585 = vpop.trf.xlu0
  %v1586 = vpop.trf.xlu0
  %v1588 = vsel %vm414, %v1571, 0
  %v1591 = vsel %vm414, %v1572, 0
  %1593 = vmatprep.subr.mxu0 0.0
  %1594 = vmatpush1.msra.mxu0 0.0
  %1595 = vmatprep.subr.mxu0 0.0
  %1596 = vmatpush1.msra.mxu0 0.0
  %1597 = vmatprep.subr.mxu0 0.0
  %1598 = vmatpush1.msra.mxu0 0.0
  %1599 = vmatprep.subr.mxu0 0.0
  %1600 = vmatpush1.msra.mxu0 0.0
  %1601 = vmatprep.subr.mxu0 0.0
  %1602 = vmatpush1.msra.mxu0 0.0
  %1603 = vmatprep.subr.mxu0 0.0
  %1604 = vmatpush1.msra.mxu0 0.0
  %1605 = vmatprep.subr.mxu0 0.0
  %1606 = vmatpush1.msra.mxu0 0.0
  %1607 = vmatprep.subr.mxu0 0.0
  %1608 = vmatpush1.msra.mxu0 0.0
  %1609 = vmatprep.subr.mxu0 0.0
  %1610 = vmatpush1.msra.mxu0 0.0
  %1611 = vmatprep.subr.mxu0 0.0
  %1612 = vmatpush1.msra.mxu0 0.0
  %1613 = vmatprep.subr.mxu0 0.0
  %1614 = vmatpush1.msra.mxu0 0.0
  %1615 = vmatprep.subr.mxu0 0.0
  %1616 = vmatpush1.msra.mxu0 0.0
  %1617 = vmatprep.subr.mxu0 0.0
  %1618 = vmatpush1.msra.mxu0 0.0
  %1619 = vmatprep.subr.mxu0 0.0
  %1620 = vmatpush1.msra.mxu0 0.0
  %1621 = vmatprep.subr.mxu0 0.0
  %1622 = vmatpush1.msra.mxu0 %v1517
  %1623 = vmatprep.subr.mxu0 0.0
  %1624 = vmatpush1.msra.mxu0 %v1512
  %1625 = vmatprep.subr.mxu0 0.0
  %1626 = vmatpush2.msra.mxu0 0.0
  %1627 = vmatprep.subr.mxu0 0.0
  %1628 = vmatpush2.msra.mxu0 0.0
  %1629 = vmatprep.subr.mxu0 0.0
  %1630 = vmatpush2.msra.mxu0 0.0
  %1631 = vmatprep.subr.mxu0 0.0
  %1632 = vmatpush2.msra.mxu0 0.0
  %1633 = vmatprep.subr.mxu0 0.0
  %1634 = vmatpush2.msra.mxu0 0.0
  %1635 = vmatprep.subr.mxu0 0.0
  %1636 = vmatpush2.msra.mxu0 0.0
  %1637 = vmatprep.subr.mxu0 0.0
  %1638 = vmatpush2.msra.mxu0 0.0
  %1639 = vmatprep.subr.mxu0 0.0
  %1640 = vmatpush2.msra.mxu0 0.0
  %1641 = vmatprep.subr.mxu0 0.0
  %1642 = vmatpush2.msra.mxu0 0.0
  %1643 = vmatprep.subr.mxu0 0.0
  %1644 = vmatpush2.msra.mxu0 0.0
  %1645 = vmatprep.subr.mxu0 0.0
  %1646 = vmatpush2.msra.mxu0 0.0
  %1647 = vmatprep.subr.mxu0 0.0
  %1648 = vmatpush2.msra.mxu0 0.0
  %1649 = vmatprep.subr.mxu0 0.0
  %1650 = vmatpush2.msra.mxu0 0.0
  %1651 = vmatprep.subr.mxu0 0.0
  %1652 = vmatpush2.msra.mxu0 0.0
  %1653 = vmatprep.subr.mxu0 0.0
  %1654 = vmatpush2.msra.mxu0 0.0
  %1655 = vmatprep.subr.mxu0 0.0
  %1656 = vmatpush2.msra.mxu0 0.0
  %1657 = vmatprep.mubr.f32.mxu0 0.0
  %1658 = vmatmul.mubr.f32.gmra.mxu0 %v1588
  %v1659 = vpop.f32.mrf.mxu0
  %v1660 = vadd.f32 0.0, %v1659
  %v1661 = vpop.f32.mrf.mxu0
  %1662 = vmatprep.mubr.f32.mxu0 0.0
  %1663 = vmatmul.mubr.f32.gmra.mxu0 %v1591
  %v1664 = vpop.f32.mrf.mxu0
  %v1665 = vadd.f32 0.0, %v1664
  %v1666 = vpop.f32.mrf.mxu0
  %1667 = vdwg.mxu0
  %v1668 = vmul.f32 %v1660, 0.25
  %v1669 = vmul.f32 %v1665, 0.25
  %v1670 = vadd.f32 %v1668, %v125
  %v1671 = vadd.f32 %v1669, %v126
  %v1672 = vsel %vm414, %v1670, -inf
  %1673 = vmax.xlane.f32.xlu0 %v1672
  %v1674 = vpop.xlane.xlu0 %1673
  %v1675 = vsel %vm414, %v1671, -inf
  %1676 = vmax.xlane.f32.xlu0 %v1675
  %v1677 = vpop.xlane.xlu0 %1676
  %v1678 = vsub.f32 %v1670, %v1674
  %v1679 = vsub.f32 %v1671, %v1677
  %v1680 = vmul.f32 %v1678, 1.442695
  %v1681 = vpow.pop %v1680
  %v1682 = vmul.f32 %v1679, 1.442695
  %v1683 = vpow.pop %v1682
  %v1684 = vsel %vm414, %v1681, 0.0
  %1685 = vadd.xlane.f32.xlu0 %v1684
  %v1686 = vpop.xlane.xlu0 %1685
  %v1687 = vsel %vm414, %v1683, 0.0
  %1688 = vadd.xlane.f32.xlu0 %v1687
  %v1689 = vpop.xlane.xlu0 %1688
  %v1690 = vrcp.pop %v1686
  %v1691 = vrcp.pop %v1689
  %v1692 = vmul.f32 %v1681, %v1690
  %v1693 = vmul.f32 %v1683, %v1691
  %v1695 = vsel %vm414, %v1692, 0
  %v1698 = vsel %vm414, %v1693, 0
  %v1701 = vsel %vm414, %v1532, 0
  %v1704 = vsel %vm414, %v1537, 0
  %1706 = vmatprep.subr.mxu0 0.0
  %1707 = vmatpush1.xpose.msra.mxu0 0.0
  %1708 = vmatprep.subr.mxu0 0.0
  %1709 = vmatpush1.xpose.msra.mxu0 0.0
  %1710 = vmatprep.subr.mxu0 0.0
  %1711 = vmatpush1.xpose.msra.mxu0 0.0
  %1712 = vmatprep.subr.mxu0 0.0
  %1713 = vmatpush1.xpose.msra.mxu0 0.0
  %1714 = vmatprep.subr.mxu0 0.0
  %1715 = vmatpush1.xpose.msra.mxu0 0.0
  %1716 = vmatprep.subr.mxu0 0.0
  %1717 = vmatpush1.xpose.msra.mxu0 0.0
  %1718 = vmatprep.subr.mxu0 0.0
  %1719 = vmatpush1.xpose.msra.mxu0 0.0
  %1720 = vmatprep.subr.mxu0 0.0
  %1721 = vmatpush1.xpose.msra.mxu0 0.0
  %1722 = vmatprep.subr.mxu0 0.0
  %1723 = vmatpush1.xpose.msra.mxu0 0.0
  %1724 = vmatprep.subr.mxu0 0.0
  %1725 = vmatpush1.xpose.msra.mxu0 0.0
  %1726 = vmatprep.subr.mxu0 0.0
  %1727 = vmatpush1.xpose.msra.mxu0 0.0
  %1728 = vmatprep.subr.mxu0 0.0
  %1729 = vmatpush1.xpose.msra.mxu0 0.0
  %1730 = vmatprep.subr.mxu0 0.0
  %1731 = vmatpush1.xpose.msra.mxu0 0.0
  %1732 = vmatprep.subr.mxu0 0.0
  %1733 = vmatpush1.xpose.msra.mxu0 0.0
  %1734 = vmatprep.subr.mxu0 0.0
  %1735 = vmatpush1.xpose.msra.mxu0 %v1704
  %1736 = vmatprep.subr.mxu0 0.0
  %1737 = vmatpush1.xpose.msra.mxu0 %v1701
  %1738 = vmatprep.subr.mxu0 0.0
  %1739 = vmatpush2.xpose.msra.mxu0 0.0
  %1740 = vmatprep.subr.mxu0 0.0
  %1741 = vmatpush2.xpose.msra.mxu0 0.0
  %1742 = vmatprep.subr.mxu0 0.0
  %1743 = vmatpush2.xpose.msra.mxu0 0.0
  %1744 = vmatprep.subr.mxu0 0.0
  %1745 = vmatpush2.xpose.msra.mxu0 0.0
  %1746 = vmatprep.subr.mxu0 0.0
  %1747 = vmatpush2.xpose.msra.mxu0 0.0
  %1748 = vmatprep.subr.mxu0 0.0
  %1749 = vmatpush2.xpose.msra.mxu0 0.0
  %1750 = vmatprep.subr.mxu0 0.0
  %1751 = vmatpush2.xpose.msra.mxu0 0.0
  %1752 = vmatprep.subr.mxu0 0.0
  %1753 = vmatpush2.xpose.msra.mxu0 0.0
  %1754 = vmatprep.subr.mxu0 0.0
  %1755 = vmatpush2.xpose.msra.mxu0 0.0
  %1756 = vmatprep.subr.mxu0 0.0
  %1757 = vmatpush2.xpose.msra.mxu0 0.0
  %1758 = vmatprep.subr.mxu0 0.0
  %1759 = vmatpush2.xpose.msra.mxu0 0.0
  %1760 = vmatprep.subr.mxu0 0.0
  %1761 = vmatpush2.xpose.msra.mxu0 0.0
  %1762 = vmatprep.subr.mxu0 0.0
  %1763 = vmatpush2.xpose.msra.mxu0 0.0
  %1764 = vmatprep.subr.mxu0 0.0
  %1765 = vmatpush2.xpose.msra.mxu0 0.0
  %1766 = vmatprep.subr.mxu0 0.0
  %1767 = vmatpush2.xpose.msra.mxu0 0.0
  %1768 = vmatprep.subr.mxu0 0.0
  %1769 = vmatpush2.xpose.msra.mxu0 0.0
  %1770 = vmatprep.mubr.f32.mxu0 0.0
  %1771 = vmatmul.mubr.f32.gmra.mxu0 %v1695
  %v1772 = vpop.f32.mrf.mxu0
  %v1773 = vadd.f32 0.0, %v1772
  %v1774 = vpop.f32.mrf.mxu0
  %1775 = vmatprep.mubr.f32.mxu0 0.0
  %1776 = vmatmul.mubr.f32.gmra.mxu0 %v1698
  %v1777 = vpop.f32.mrf.mxu0
  %v1778 = vadd.f32 0.0, %v1777
  %v1779 = vpop.f32.mrf.mxu0
  %1780 = vdwg.mxu0
  %1781 = vxpose.xlu0.b32.start [1/16] %v1502, 128
  %1782 = vxpose.xlu0.b32.cont [2/16] %v1507, 128
  %1783 = vxpose.xlu0.b32.cont [3/16] 0.0, 128
  %1784 = vxpose.xlu0.b32.cont [4/16] 0.0, 128
  %1785 = vxpose.xlu0.b32.cont [5/16] 0.0, 128
  %1786 = vxpose.xlu0.b32.cont [6/16] 0.0, 128
  %1787 = vxpose.xlu0.b32.cont [7/16] 0.0, 128
  %1788 = vxpose.xlu0.b32.cont [8/16] 0.0, 128
  %1789 = vxpose.xlu0.b32.cont [9/16] 0.0, 128
  %1790 = vxpose.xlu0.b32.cont [10/16] 0.0, 128
  %1791 = vxpose.xlu0.b32.cont [11/16] 0.0, 128
  %1792 = vxpose.xlu0.b32.cont [12/16] 0.0, 128
  %1793 = vxpose.xlu0.b32.cont [13/16] 0.0, 128
  %1794 = vxpose.xlu0.b32.cont [14/16] 0.0, 128
  %1795 = vxpose.xlu0.b32.cont [15/16] 0.0, 128
  %1796 = vxpose.xlu0.b32.end [16/16] 0.0, 128
  %v1797 = vpop.trf.xlu0
  %v1798 = vpop.trf.xlu0
  %v1799 = vpop.trf.xlu0
  %v1800 = vpop.trf.xlu0
  %v1801 = vpop.trf.xlu0
  %v1802 = vpop.trf.xlu0
  %v1803 = vpop.trf.xlu0
  %v1804 = vpop.trf.xlu0
  %v1805 = vpop.trf.xlu0
  %v1806 = vpop.trf.xlu0
  %v1807 = vpop.trf.xlu0
  %v1808 = vpop.trf.xlu0
  %v1809 = vpop.trf.xlu0
  %v1810 = vpop.trf.xlu0
  %v1811 = vpop.trf.xlu0
  %v1812 = vpop.trf.xlu0
  %v1814 = vsel %vm414, %v1797, 0
  %v1817 = vsel %vm414, %v1798, 0
  %1819 = vmatprep.subr.mxu0 0.0
  %1820 = vmatpush1.msra.mxu0 0.0
  %1821 = vmatprep.subr.mxu0 0.0
  %1822 = vmatpush1.msra.mxu0 0.0
  %1823 = vmatprep.subr.mxu0 0.0
  %1824 = vmatpush1.msra.mxu0 0.0
  %1825 = vmatprep.subr.mxu0 0.0
  %1826 = vmatpush1.msra.mxu0 0.0
  %1827 = vmatprep.subr.mxu0 0.0
  %1828 = vmatpush1.msra.mxu0 0.0
  %1829 = vmatprep.subr.mxu0 0.0
  %1830 = vmatpush1.msra.mxu0 0.0
  %1831 = vmatprep.subr.mxu0 0.0
  %1832 = vmatpush1.msra.mxu0 0.0
  %1833 = vmatprep.subr.mxu0 0.0
  %1834 = vmatpush1.msra.mxu0 0.0
  %1835 = vmatprep.subr.mxu0 0.0
  %1836 = vmatpush1.msra.mxu0 0.0
  %1837 = vmatprep.subr.mxu0 0.0
  %1838 = vmatpush1.msra.mxu0 0.0
  %1839 = vmatprep.subr.mxu0 0.0
  %1840 = vmatpush1.msra.mxu0 0.0
  %1841 = vmatprep.subr.mxu0 0.0
  %1842 = vmatpush1.msra.mxu0 0.0
  %1843 = vmatprep.subr.mxu0 0.0
  %1844 = vmatpush1.msra.mxu0 0.0
  %1845 = vmatprep.subr.mxu0 0.0
  %1846 = vmatpush1.msra.mxu0 0.0
  %1847 = vmatprep.subr.mxu0 0.0
  %1848 = vmatpush1.msra.mxu0 %v1527
  %1849 = vmatprep.subr.mxu0 0.0
  %1850 = vmatpush1.msra.mxu0 %v1522
  %1851 = vmatprep.subr.mxu0 0.0
  %1852 = vmatpush2.msra.mxu0 0.0
  %1853 = vmatprep.subr.mxu0 0.0
  %1854 = vmatpush2.msra.mxu0 0.0
  %1855 = vmatprep.subr.mxu0 0.0
  %1856 = vmatpush2.msra.mxu0 0.0
  %1857 = vmatprep.subr.mxu0 0.0
  %1858 = vmatpush2.msra.mxu0 0.0
  %1859 = vmatprep.subr.mxu0 0.0
  %1860 = vmatpush2.msra.mxu0 0.0
  %1861 = vmatprep.subr.mxu0 0.0
  %1862 = vmatpush2.msra.mxu0 0.0
  %1863 = vmatprep.subr.mxu0 0.0
  %1864 = vmatpush2.msra.mxu0 0.0
  %1865 = vmatprep.subr.mxu0 0.0
  %1866 = vmatpush2.msra.mxu0 0.0
  %1867 = vmatprep.subr.mxu0 0.0
  %1868 = vmatpush2.msra.mxu0 0.0
  %1869 = vmatprep.subr.mxu0 0.0
  %1870 = vmatpush2.msra.mxu0 0.0
  %1871 = vmatprep.subr.mxu0 0.0
  %1872 = vmatpush2.msra.mxu0 0.0
  %1873 = vmatprep.subr.mxu0 0.0
  %1874 = vmatpush2.msra.mxu0 0.0
  %1875 = vmatprep.subr.mxu0 0.0
  %1876 = vmatpush2.msra.mxu0 0.0
  %1877 = vmatprep.subr.mxu0 0.0
  %1878 = vmatpush2.msra.mxu0 0.0
  %1879 = vmatprep.subr.mxu0 0.0
  %1880 = vmatpush2.msra.mxu0 0.0
  %1881 = vmatprep.subr.mxu0 0.0
  %1882 = vmatpush2.msra.mxu0 0.0
  %1883 = vmatprep.mubr.f32.mxu0 0.0
  %1884 = vmatmul.mubr.f32.gmra.mxu0 %v1814
  %v1885 = vpop.f32.mrf.mxu0
  %v1886 = vadd.f32 0.0, %v1885
  %v1887 = vpop.f32.mrf.mxu0
  %1888 = vmatprep.mubr.f32.mxu0 0.0
  %1889 = vmatmul.mubr.f32.gmra.mxu0 %v1817
  %v1890 = vpop.f32.mrf.mxu0
  %v1891 = vadd.f32 0.0, %v1890
  %v1892 = vpop.f32.mrf.mxu0
  %1893 = vdwg.mxu0
  %v1894 = vmul.f32 %v1886, 0.25
  %v1895 = vmul.f32 %v1891, 0.25
  %v1896 = vadd.f32 %v1894, %v125
  %v1897 = vadd.f32 %v1895, %v126
  %v1898 = vsel %vm414, %v1896, -inf
  %1899 = vmax.xlane.f32.xlu0 %v1898
  %v1900 = vpop.xlane.xlu0 %1899
  %v1901 = vsel %vm414, %v1897, -inf
  %1902 = vmax.xlane.f32.xlu0 %v1901
  %v1903 = vpop.xlane.xlu0 %1902
  %v1904 = vsub.f32 %v1896, %v1900
  %v1905 = vsub.f32 %v1897, %v1903
  %v1906 = vmul.f32 %v1904, 1.442695
  %v1907 = vpow.pop %v1906
  %v1908 = vmul.f32 %v1905, 1.442695
  %v1909 = vpow.pop %v1908
  %v1910 = vsel %vm414, %v1907, 0.0
  %1911 = vadd.xlane.f32.xlu0 %v1910
  %v1912 = vpop.xlane.xlu0 %1911
  %v1913 = vsel %vm414, %v1909, 0.0
  %1914 = vadd.xlane.f32.xlu0 %v1913
  %v1915 = vpop.xlane.xlu0 %1914
  %v1916 = vrcp.pop %v1912
  %v1917 = vrcp.pop %v1915
  %v1918 = vmul.f32 %v1907, %v1916
  %v1919 = vmul.f32 %v1909, %v1917
  %v1921 = vsel %vm414, %v1918, 0
  %v1924 = vsel %vm414, %v1919, 0
  %v1927 = vsel %vm414, %v1542, 0
  %v1930 = vsel %vm414, %v1547, 0
  %1932 = vmatprep.subr.mxu0 0.0
  %1933 = vmatpush1.xpose.msra.mxu0 0.0
  %1934 = vmatprep.subr.mxu0 0.0
  %1935 = vmatpush1.xpose.msra.mxu0 0.0
  %1936 = vmatprep.subr.mxu0 0.0
  %1937 = vmatpush1.xpose.msra.mxu0 0.0
  %1938 = vmatprep.subr.mxu0 0.0
  %1939 = vmatpush1.xpose.msra.mxu0 0.0
  %1940 = vmatprep.subr.mxu0 0.0
  %1941 = vmatpush1.xpose.msra.mxu0 0.0
  %1942 = vmatprep.subr.mxu0 0.0
  %1943 = vmatpush1.xpose.msra.mxu0 0.0
  %1944 = vmatprep.subr.mxu0 0.0
  %1945 = vmatpush1.xpose.msra.mxu0 0.0
  %1946 = vmatprep.subr.mxu0 0.0
  %1947 = vmatpush1.xpose.msra.mxu0 0.0
  %1948 = vmatprep.subr.mxu0 0.0
  %1949 = vmatpush1.xpose.msra.mxu0 0.0
  %1950 = vmatprep.subr.mxu0 0.0
  %1951 = vmatpush1.xpose.msra.mxu0 0.0
  %1952 = vmatprep.subr.mxu0 0.0
  %1953 = vmatpush1.xpose.msra.mxu0 0.0
  %1954 = vmatprep.subr.mxu0 0.0
  %1955 = vmatpush1.xpose.msra.mxu0 0.0
  %1956 = vmatprep.subr.mxu0 0.0
  %1957 = vmatpush1.xpose.msra.mxu0 0.0
  %1958 = vmatprep.subr.mxu0 0.0
  %1959 = vmatpush1.xpose.msra.mxu0 0.0
  %1960 = vmatprep.subr.mxu0 0.0
  %1961 = vmatpush1.xpose.msra.mxu0 %v1930
  %1962 = vmatprep.subr.mxu0 0.0
  %1963 = vmatpush1.xpose.msra.mxu0 %v1927
  %1964 = vmatprep.subr.mxu0 0.0
  %1965 = vmatpush2.xpose.msra.mxu0 0.0
  %1966 = vmatprep.subr.mxu0 0.0
  %1967 = vmatpush2.xpose.msra.mxu0 0.0
  %1968 = vmatprep.subr.mxu0 0.0
  %1969 = vmatpush2.xpose.msra.mxu0 0.0
  %1970 = vmatprep.subr.mxu0 0.0
  %1971 = vmatpush2.xpose.msra.mxu0 0.0
  %1972 = vmatprep.subr.mxu0 0.0
  %1973 = vmatpush2.xpose.msra.mxu0 0.0
  %1974 = vmatprep.subr.mxu0 0.0
  %1975 = vmatpush2.xpose.msra.mxu0 0.0
  %1976 = vmatprep.subr.mxu0 0.0
  %1977 = vmatpush2.xpose.msra.mxu0 0.0
  %1978 = vmatprep.subr.mxu0 0.0
  %1979 = vmatpush2.xpose.msra.mxu0 0.0
  %1980 = vmatprep.subr.mxu0 0.0
  %1981 = vmatpush2.xpose.msra.mxu0 0.0
  %1982 = vmatprep.subr.mxu0 0.0
  %1983 = vmatpush2.xpose.msra.mxu0 0.0
  %1984 = vmatprep.subr.mxu0 0.0
  %1985 = vmatpush2.xpose.msra.mxu0 0.0
  %1986 = vmatprep.subr.mxu0 0.0
  %1987 = vmatpush2.xpose.msra.mxu0 0.0
  %1988 = vmatprep.subr.mxu0 0.0
  %1989 = vmatpush2.xpose.msra.mxu0 0.0
  %1990 = vmatprep.subr.mxu0 0.0
  %1991 = vmatpush2.xpose.msra.mxu0 0.0
  %1992 = vmatprep.subr.mxu0 0.0
  %1993 = vmatpush2.xpose.msra.mxu0 0.0
  %1994 = vmatprep.subr.mxu0 0.0
  %1995 = vmatpush2.xpose.msra.mxu0 0.0
  %1996 = vmatprep.mubr.f32.mxu0 0.0
  %1997 = vmatmul.mubr.f32.gmra.mxu0 %v1921
  %v1998 = vpop.f32.mrf.mxu0
  %v1999 = vadd.f32 0.0, %v1998
  %v2000 = vpop.f32.mrf.mxu0
  %2001 = vmatprep.mubr.f32.mxu0 0.0
  %2002 = vmatmul.mubr.f32.gmra.mxu0 %v1924
  %v2003 = vpop.f32.mrf.mxu0
  %v2004 = vadd.f32 0.0, %v2003
  %v2005 = vpop.f32.mrf.mxu0
  %2006 = vdwg.mxu0
  %v2008 = vsel %vm414, %v1999, 0
  %v2011 = vsel %vm414, %v2004, 0
  %2013 = vmatprep.subr.mxu0 0.0
  %2014 = vmatpush1.msra.mxu0 0.0
  %2015 = vmatprep.subr.mxu0 0.0
  %2016 = vmatpush1.msra.mxu0 0.0
  %2017 = vmatprep.subr.mxu0 0.0
  %2018 = vmatpush1.msra.mxu0 0.0
  %2019 = vmatprep.subr.mxu0 0.0
  %2020 = vmatpush1.msra.mxu0 0.0
  %2021 = vmatprep.subr.mxu0 0.0
  %2022 = vmatpush1.msra.mxu0 0.0
  %2023 = vmatprep.subr.mxu0 0.0
  %2024 = vmatpush1.msra.mxu0 0.0
  %2025 = vmatprep.subr.mxu0 0.0
  %2026 = vmatpush1.msra.mxu0 0.0
  %2027 = vmatprep.subr.mxu0 0.0
  %2028 = vmatpush1.msra.mxu0 0.0
  %2029 = vmatprep.subr.mxu0 0.0
  %2030 = vmatpush1.msra.mxu0 0.0
  %2031 = vmatprep.subr.mxu0 0.0
  %2032 = vmatpush1.msra.mxu0 0.0
  %2033 = vmatprep.subr.mxu0 0.0
  %2034 = vmatpush1.msra.mxu0 0.0
  %2035 = vmatprep.subr.mxu0 0.0
  %2036 = vmatpush1.msra.mxu0 0.0
  %2037 = vmatprep.subr.mxu0 0.0
  %2038 = vmatpush1.msra.mxu0 0.0
  %2039 = vmatprep.subr.mxu0 0.0
  %2040 = vmatpush1.msra.mxu0 0.0
  %2041 = vmatprep.subr.mxu0 0.0
  %2042 = vmatpush1.msra.mxu0 %v1554
  %2043 = vmatprep.subr.mxu0 0.0
  %2044 = vmatpush1.msra.mxu0 %v1553
  %2045 = vmatprep.subr.mxu0 0.0
  %2046 = vmatpush2.msra.mxu0 0.0
  %2047 = vmatprep.subr.mxu0 0.0
  %2048 = vmatpush2.msra.mxu0 0.0
  %2049 = vmatprep.subr.mxu0 0.0
  %2050 = vmatpush2.msra.mxu0 0.0
  %2051 = vmatprep.subr.mxu0 0.0
  %2052 = vmatpush2.msra.mxu0 0.0
  %2053 = vmatprep.subr.mxu0 0.0
  %2054 = vmatpush2.msra.mxu0 0.0
  %2055 = vmatprep.subr.mxu0 0.0
  %2056 = vmatpush2.msra.mxu0 0.0
  %2057 = vmatprep.subr.mxu0 0.0
  %2058 = vmatpush2.msra.mxu0 0.0
  %2059 = vmatprep.subr.mxu0 0.0
  %2060 = vmatpush2.msra.mxu0 0.0
  %2061 = vmatprep.subr.mxu0 0.0
  %2062 = vmatpush2.msra.mxu0 0.0
  %2063 = vmatprep.subr.mxu0 0.0
  %2064 = vmatpush2.msra.mxu0 0.0
  %2065 = vmatprep.subr.mxu0 0.0
  %2066 = vmatpush2.msra.mxu0 0.0
  %2067 = vmatprep.subr.mxu0 0.0
  %2068 = vmatpush2.msra.mxu0 0.0
  %2069 = vmatprep.subr.mxu0 0.0
  %2070 = vmatpush2.msra.mxu0 0.0
  %2071 = vmatprep.subr.mxu0 0.0
  %2072 = vmatpush2.msra.mxu0 0.0
  %2073 = vmatprep.subr.mxu0 0.0
  %2074 = vmatpush2.msra.mxu0 0.0
  %2075 = vmatprep.subr.mxu0 0.0
  %2076 = vmatpush2.msra.mxu0 0.0
  %2077 = vmatprep.mubr.f32.mxu0 0.0
  %2078 = vmatmul.mubr.f32.gmra.mxu0 %v2008
  %v2079 = vpop.f32.mrf.mxu0
  %v2080 = vadd.f32 0.0, %v2079
  %v2081 = vpop.f32.mrf.mxu0
  %2082 = vmatprep.mubr.f32.mxu0 0.0
  %2083 = vmatmul.mubr.f32.gmra.mxu0 %v2011
  %v2084 = vpop.f32.mrf.mxu0
  %v2085 = vadd.f32 0.0, %v2084
  %v2086 = vpop.f32.mrf.mxu0
  %2087 = vdwg.mxu0
  %v2089 = vsel %vm414, %v1773, 0
  %v2092 = vsel %vm414, %v1778, 0
  %2094 = vmatprep.subr.mxu0 0.0
  %2095 = vmatpush1.msra.mxu0 0.0
  %2096 = vmatprep.subr.mxu0 0.0
  %2097 = vmatpush1.msra.mxu0 0.0
  %2098 = vmatprep.subr.mxu0 0.0
  %2099 = vmatpush1.msra.mxu0 0.0
  %2100 = vmatprep.subr.mxu0 0.0
  %2101 = vmatpush1.msra.mxu0 0.0
  %2102 = vmatprep.subr.mxu0 0.0
  %2103 = vmatpush1.msra.mxu0 0.0
  %2104 = vmatprep.subr.mxu0 0.0
  %2105 = vmatpush1.msra.mxu0 0.0
  %2106 = vmatprep.subr.mxu0 0.0
  %2107 = vmatpush1.msra.mxu0 0.0
  %2108 = vmatprep.subr.mxu0 0.0
  %2109 = vmatpush1.msra.mxu0 0.0
  %2110 = vmatprep.subr.mxu0 0.0
  %2111 = vmatpush1.msra.mxu0 0.0
  %2112 = vmatprep.subr.mxu0 0.0
  %2113 = vmatpush1.msra.mxu0 0.0
  %2114 = vmatprep.subr.mxu0 0.0
  %2115 = vmatpush1.msra.mxu0 0.0
  %2116 = vmatprep.subr.mxu0 0.0
  %2117 = vmatpush1.msra.mxu0 0.0
  %2118 = vmatprep.subr.mxu0 0.0
  %2119 = vmatpush1.msra.mxu0 0.0
  %2120 = vmatprep.subr.mxu0 0.0
  %2121 = vmatpush1.msra.mxu0 0.0
  %2122 = vmatprep.subr.mxu0 0.0
  %2123 = vmatpush1.msra.mxu0 %v1552
  %2124 = vmatprep.subr.mxu0 0.0
  %2125 = vmatpush1.msra.mxu0 %v1551
  %2126 = vmatprep.subr.mxu0 0.0
  %2127 = vmatpush2.msra.mxu0 0.0
  %2128 = vmatprep.subr.mxu0 0.0
  %2129 = vmatpush2.msra.mxu0 0.0
  %2130 = vmatprep.subr.mxu0 0.0
  %2131 = vmatpush2.msra.mxu0 0.0
  %2132 = vmatprep.subr.mxu0 0.0
  %2133 = vmatpush2.msra.mxu0 0.0
  %2134 = vmatprep.subr.mxu0 0.0
  %2135 = vmatpush2.msra.mxu0 0.0
  %2136 = vmatprep.subr.mxu0 0.0
  %2137 = vmatpush2.msra.mxu0 0.0
  %2138 = vmatprep.subr.mxu0 0.0
  %2139 = vmatpush2.msra.mxu0 0.0
  %2140 = vmatprep.subr.mxu0 0.0
  %2141 = vmatpush2.msra.mxu0 0.0
  %2142 = vmatprep.subr.mxu0 0.0
  %2143 = vmatpush2.msra.mxu0 0.0
  %2144 = vmatprep.subr.mxu0 0.0
  %2145 = vmatpush2.msra.mxu0 0.0
  %2146 = vmatprep.subr.mxu0 0.0
  %2147 = vmatpush2.msra.mxu0 0.0
  %2148 = vmatprep.subr.mxu0 0.0
  %2149 = vmatpush2.msra.mxu0 0.0
  %2150 = vmatprep.subr.mxu0 0.0
  %2151 = vmatpush2.msra.mxu0 0.0
  %2152 = vmatprep.subr.mxu0 0.0
  %2153 = vmatpush2.msra.mxu0 0.0
  %2154 = vmatprep.subr.mxu0 0.0
  %2155 = vmatpush2.msra.mxu0 0.0
  %2156 = vmatprep.subr.mxu0 0.0
  %2157 = vmatpush2.msra.mxu0 0.0
  %2158 = vmatprep.mubr.f32.mxu0 0.0
  %2159 = vmatmul.mubr.f32.gmra.mxu0 %v2089
  %v2160 = vpop.f32.mrf.mxu0
  %v2161 = vadd.f32 %v2080, %v2160
  %v2162 = vpop.f32.mrf.mxu0
  %2163 = vmatprep.mubr.f32.mxu0 0.0
  %2164 = vmatmul.mubr.f32.gmra.mxu0 %v2092
  %v2165 = vpop.f32.mrf.mxu0
  %v2166 = vadd.f32 %v2085, %v2165
  %v2167 = vpop.f32.mrf.mxu0
  %2168 = vdwg.mxu0
  %s2169 = scalar_lea.vmem %s8, 1
  %v2170 = vld [vmem:[%s2169] sm:$0x1]
  %v2172 = vlaneseq
  %v2173 = vshrl.u32 %v2172, 7
  %v2174 = vsub.s32 0, %v2173
  %v2175 = vrot.slane %v2170, %v2174
  %v2177 = vadd.f32 %v2161, %v2175
  %v2178 = vadd.f32 %v2166, %v2175
  %v2179 = vadd.f32 %v2177, %v1295
  %v2180 = vadd.f32 %v2178, %v1296
  %s2181 = scalar_lea.vmem %s9, 1
  %v2182 = vld [vmem:[%s2181] sm:$0x1]
  %s2183 = scalar_lea.vmem %s10, 1
  %v2184 = vld [vmem:[%s2183] sm:$0x1]
  %v2185 = vsel %vm60, %v2179, 0.0
  %2186 = vadd.xlane.f32.xlu0 %v2185
  %v2187 = vpop.xlane.xlu0 %2186
  %v2188 = vsel %vm60, %v2180, 0.0
  %2189 = vadd.xlane.f32.xlu0 %v2188
  %v2190 = vpop.xlane.xlu0 %2189
  %v2191 = vmul.f32 %v2187, %v67
  %v2192 = vmul.f32 %v2190, %v67
  %v2193 = vsub.f32 %v2179, %v2191
  %v2194 = vsub.f32 %v2180, %v2192
  %v2195 = vmul.f32 %v2193, %v2193
  %v2196 = vmul.f32 %v2194, %v2194
  %v2197 = vsel %vm60, %v2195, 0.0
  %2198 = vadd.xlane.f32.xlu0 %v2197
  %v2199 = vpop.xlane.xlu0 %2198
  %v2200 = vsel %vm60, %v2196, 0.0
  %2201 = vadd.xlane.f32.xlu0 %v2200
  %v2202 = vpop.xlane.xlu0 %2201
  %v2203 = vmul.f32 %v2199, %v67
  %v2204 = vmul.f32 %v2202, %v67
  %v2205 = vadd.f32 %v2203, 1e-12
  %v2206 = vadd.f32 %v2204, 1e-12
  %v2207 = vrsqrt.pop %v2205
  %v2208 = vrsqrt.pop %v2206
  %v2209 = vmul.f32 %v2193, %v2207
  %v2210 = vmul.f32 %v2194, %v2208
  %v2212 = vlaneseq
  %v2213 = vshrl.u32 %v2212, 7
  %v2214 = vsub.s32 0, %v2213
  %v2215 = vrot.slane %v2182, %v2214
  %v2217 = vmul.f32 %v2209, %v2215
  %v2218 = vmul.f32 %v2210, %v2215
  %v2220 = vlaneseq
  %v2221 = vshrl.u32 %v2220, 7
  %v2222 = vsub.s32 0, %v2221
  %v2223 = vrot.slane %v2184, %v2222
  %v2225 = vadd.f32 %v2217, %v2223
  %v2226 = vadd.f32 %v2218, %v2223
  %s2227 = scalar_lea.vmem %s11, 32
  %v2228 = vld [vmem:[%s2227] sm:$0xff]
  %v2229 = vld [vmem:[%s2227 + $0x8] sm:$0xff]
  %v2230 = vld [vmem:[%s2227 + $0x10] sm:$0xff]
  %v2231 = vld [vmem:[%s2227 + $0x18] sm:$0xff]
  %s2232 = scalar_lea.vmem %s12, 1
  %v2233 = vld [vmem:[%s2232] sm:$0x1]
  %v2235 = vlaneseq
  %v2236 = vshrl.u32 %v2235, 7
  %v2237 = vsub.s32 0, %v2236
  %v2238 = vrot.slane %v2233, %v2237
  %v2241 = vsel %vm60, %v2225, 0
  %v2244 = vsel %vm60, %v2226, 0
  %2246 = vmatprep.subr.mxu0 0.0
  %2247 = vmatpush1.msra.mxu0 0.0
  %2248 = vmatprep.subr.mxu0 0.0
  %2249 = vmatpush1.msra.mxu0 0.0
  %2250 = vmatprep.subr.mxu0 0.0
  %2251 = vmatpush1.msra.mxu0 0.0
  %2252 = vmatprep.subr.mxu0 0.0
  %2253 = vmatpush1.msra.mxu0 0.0
  %2254 = vmatprep.subr.mxu0 0.0
  %2255 = vmatpush1.msra.mxu0 0.0
  %2256 = vmatprep.subr.mxu0 0.0
  %2257 = vmatpush1.msra.mxu0 0.0
  %2258 = vmatprep.subr.mxu0 0.0
  %2259 = vmatpush1.msra.mxu0 0.0
  %2260 = vmatprep.subr.mxu0 0.0
  %2261 = vmatpush1.msra.mxu0 0.0
  %2262 = vmatprep.subr.mxu0 0.0
  %2263 = vmatpush1.msra.mxu0 0.0
  %2264 = vmatprep.subr.mxu0 0.0
  %2265 = vmatpush1.msra.mxu0 0.0
  %2266 = vmatprep.subr.mxu0 0.0
  %2267 = vmatpush1.msra.mxu0 0.0
  %2268 = vmatprep.subr.mxu0 0.0
  %2269 = vmatpush1.msra.mxu0 0.0
  %2270 = vmatprep.subr.mxu0 0.0
  %2271 = vmatpush1.msra.mxu0 %v2231
  %2272 = vmatprep.subr.mxu0 0.0
  %2273 = vmatpush1.msra.mxu0 %v2230
  %2274 = vmatprep.subr.mxu0 0.0
  %2275 = vmatpush1.msra.mxu0 %v2229
  %2276 = vmatprep.subr.mxu0 0.0
  %2277 = vmatpush1.msra.mxu0 %v2228
  %2278 = vmatprep.subr.mxu0 0.0
  %2279 = vmatpush2.msra.mxu0 0.0
  %2280 = vmatprep.subr.mxu0 0.0
  %2281 = vmatpush2.msra.mxu0 0.0
  %2282 = vmatprep.subr.mxu0 0.0
  %2283 = vmatpush2.msra.mxu0 0.0
  %2284 = vmatprep.subr.mxu0 0.0
  %2285 = vmatpush2.msra.mxu0 0.0
  %2286 = vmatprep.subr.mxu0 0.0
  %2287 = vmatpush2.msra.mxu0 0.0
  %2288 = vmatprep.subr.mxu0 0.0
  %2289 = vmatpush2.msra.mxu0 0.0
  %2290 = vmatprep.subr.mxu0 0.0
  %2291 = vmatpush2.msra.mxu0 0.0
  %2292 = vmatprep.subr.mxu0 0.0
  %2293 = vmatpush2.msra.mxu0 0.0
  %2294 = vmatprep.subr.mxu0 0.0
  %2295 = vmatpush2.msra.mxu0 0.0
  %2296 = vmatprep.subr.mxu0 0.0
  %2297 = vmatpush2.msra.mxu0 0.0
  %2298 = vmatprep.subr.mxu0 0.0
  %2299 = vmatpush2.msra.mxu0 0.0
  %2300 = vmatprep.subr.mxu0 0.0
  %2301 = vmatpush2.msra.mxu0 0.0
  %2302 = vmatprep.subr.mxu0 0.0
  %2303 = vmatpush2.msra.mxu0 0.0
  %2304 = vmatprep.subr.mxu0 0.0
  %2305 = vmatpush2.msra.mxu0 0.0
  %2306 = vmatprep.subr.mxu0 0.0
  %2307 = vmatpush2.msra.mxu0 0.0
  %2308 = vmatprep.subr.mxu0 0.0
  %2309 = vmatpush2.msra.mxu0 0.0
  %2310 = vmatprep.mubr.f32.mxu0 0.0
  %2311 = vmatmul.mubr.f32.gmra.mxu0 %v2241
  %v2312 = vpop.f32.mrf.mxu0
  %v2313 = vadd.f32 %v2238, %v2312
  %v2314 = vpop.f32.mrf.mxu0
  %2315 = vmatprep.mubr.f32.mxu0 0.0
  %2316 = vmatmul.mubr.f32.gmra.mxu0 %v2244
  %v2317 = vpop.f32.mrf.mxu0
  %v2318 = vadd.f32 %v2238, %v2317
  %v2319 = vpop.f32.mrf.mxu0
  %2320 = vdwg.mxu0
  %v2321 = vmul.f32 %v2313, 0.5
  %v2322 = vmul.f32 %v2318, 0.5
  %v2323 = vmul.f32 %v2313, 0.70710677
  %v2324 = vmul.f32 %v2318, 0.70710677
  %v2325 = verf.f32.pop %v2323
  %v2326 = verf.f32.pop %v2324
  %v2327 = vadd.f32 %v2325, 1.0
  %v2328 = vadd.f32 %v2326, 1.0
  %v2329 = vmul.f32 %v2321, %v2327
  %v2330 = vmul.f32 %v2322, %v2328
  %s2331 = scalar_lea.vmem %s13, 64
  %v2332 = vld [vmem:[%s2331] sm:$0xff]
  %v2333 = vld [vmem:[%s2331 + $0x8] sm:$0xff]
  %v2334 = vld [vmem:[%s2331 + $0x10] sm:$0xff]
  %v2335 = vld [vmem:[%s2331 + $0x18] sm:$0xff]
  %v2336 = vld [vmem:[%s2331 + $0x20] sm:$0xff]
  %v2337 = vld [vmem:[%s2331 + $0x28] sm:$0xff]
  %v2338 = vld [vmem:[%s2331 + $0x30] sm:$0xff]
  %v2339 = vld [vmem:[%s2331 + $0x38] sm:$0xff]
  %s2340 = scalar_lea.vmem %s14, 1
  %v2341 = vld [vmem:[%s2340] sm:$0x1]
  %v2343 = vlaneseq
  %v2344 = vshrl.u32 %v2343, 7
  %v2345 = vsub.s32 0, %v2344
  %v2346 = vrot.slane %v2341, %v2345
  %v2349 = vsel %vm1169, %v2329, 0
  %v2352 = vsel %vm1169, %v2330, 0
  %2354 = vmatprep.subr.mxu0 0.0
  %2355 = vmatpush1.msra.mxu0 0.0
  %2356 = vmatprep.subr.mxu0 0.0
  %2357 = vmatpush1.msra.mxu0 0.0
  %2358 = vmatprep.subr.mxu0 0.0
  %2359 = vmatpush1.msra.mxu0 0.0
  %2360 = vmatprep.subr.mxu0 0.0
  %2361 = vmatpush1.msra.mxu0 0.0
  %2362 = vmatprep.subr.mxu0 0.0
  %2363 = vmatpush1.msra.mxu0 0.0
  %2364 = vmatprep.subr.mxu0 0.0
  %2365 = vmatpush1.msra.mxu0 0.0
  %2366 = vmatprep.subr.mxu0 0.0
  %2367 = vmatpush1.msra.mxu0 0.0
  %2368 = vmatprep.subr.mxu0 0.0
  %2369 = vmatpush1.msra.mxu0 0.0
  %2370 = vmatprep.subr.mxu0 0.0
  %2371 = vmatpush1.msra.mxu0 %v2339
  %2372 = vmatprep.subr.mxu0 0.0
  %2373 = vmatpush1.msra.mxu0 %v2338
  %2374 = vmatprep.subr.mxu0 0.0
  %2375 = vmatpush1.msra.mxu0 %v2337
  %2376 = vmatprep.subr.mxu0 0.0
  %2377 = vmatpush1.msra.mxu0 %v2336
  %2378 = vmatprep.subr.mxu0 0.0
  %2379 = vmatpush1.msra.mxu0 %v2335
  %2380 = vmatprep.subr.mxu0 0.0
  %2381 = vmatpush1.msra.mxu0 %v2334
  %2382 = vmatprep.subr.mxu0 0.0
  %2383 = vmatpush1.msra.mxu0 %v2333
  %2384 = vmatprep.subr.mxu0 0.0
  %2385 = vmatpush1.msra.mxu0 %v2332
  %2386 = vmatprep.subr.mxu0 0.0
  %2387 = vmatpush2.msra.mxu0 0.0
  %2388 = vmatprep.subr.mxu0 0.0
  %2389 = vmatpush2.msra.mxu0 0.0
  %2390 = vmatprep.subr.mxu0 0.0
  %2391 = vmatpush2.msra.mxu0 0.0
  %2392 = vmatprep.subr.mxu0 0.0
  %2393 = vmatpush2.msra.mxu0 0.0
  %2394 = vmatprep.subr.mxu0 0.0
  %2395 = vmatpush2.msra.mxu0 0.0
  %2396 = vmatprep.subr.mxu0 0.0
  %2397 = vmatpush2.msra.mxu0 0.0
  %2398 = vmatprep.subr.mxu0 0.0
  %2399 = vmatpush2.msra.mxu0 0.0
  %2400 = vmatprep.subr.mxu0 0.0
  %2401 = vmatpush2.msra.mxu0 0.0
  %2402 = vmatprep.subr.mxu0 0.0
  %2403 = vmatpush2.msra.mxu0 0.0
  %2404 = vmatprep.subr.mxu0 0.0
  %2405 = vmatpush2.msra.mxu0 0.0
  %2406 = vmatprep.subr.mxu0 0.0
  %2407 = vmatpush2.msra.mxu0 0.0
  %2408 = vmatprep.subr.mxu0 0.0
  %2409 = vmatpush2.msra.mxu0 0.0
  %2410 = vmatprep.subr.mxu0 0.0
  %2411 = vmatpush2.msra.mxu0 0.0
  %2412 = vmatprep.subr.mxu0 0.0
  %2413 = vmatpush2.msra.mxu0 0.0
  %2414 = vmatprep.subr.mxu0 0.0
  %2415 = vmatpush2.msra.mxu0 0.0
  %2416 = vmatprep.subr.mxu0 0.0
  %2417 = vmatpush2.msra.mxu0 0.0
  %2418 = vmatprep.mubr.f32.mxu0 0.0
  %2419 = vmatmul.mubr.f32.gmra.mxu0 %v2349
  %v2420 = vpop.f32.mrf.mxu0
  %v2421 = vadd.f32 %v2346, %v2420
  %v2422 = vpop.f32.mrf.mxu0
  %2423 = vmatprep.mubr.f32.mxu0 0.0
  %2424 = vmatmul.mubr.f32.gmra.mxu0 %v2352
  %v2425 = vpop.f32.mrf.mxu0
  %v2426 = vadd.f32 %v2346, %v2425
  %v2427 = vpop.f32.mrf.mxu0
  %2428 = vdwg.mxu0
  %v2429 = vadd.f32 %v2421, %v2225
  %v2430 = vadd.f32 %v2426, %v2226
  %s2431 = scalar_lea.vmem %s15, 1
  %v2432 = vld [vmem:[%s2431] sm:$0x1]
  %s2433 = scalar_lea.vmem %s16, 1
  %v2434 = vld [vmem:[%s2433] sm:$0x1]
  %v2435 = vsel %vm60, %v2429, 0.0
  %2436 = vadd.xlane.f32.xlu0 %v2435
  %v2437 = vpop.xlane.xlu0 %2436
  %v2438 = vsel %vm60, %v2430, 0.0
  %2439 = vadd.xlane.f32.xlu0 %v2438
  %v2440 = vpop.xlane.xlu0 %2439
  %v2441 = vmul.f32 %v2437, %v67
  %v2442 = vmul.f32 %v2440, %v67
  %v2443 = vsub.f32 %v2429, %v2441
  %v2444 = vsub.f32 %v2430, %v2442
  %v2445 = vmul.f32 %v2443, %v2443
  %v2446 = vmul.f32 %v2444, %v2444
  %v2447 = vsel %vm60, %v2445, 0.0
  %2448 = vadd.xlane.f32.xlu0 %v2447
  %v2449 = vpop.xlane.xlu0 %2448
  %v2450 = vsel %vm60, %v2446, 0.0
  %2451 = vadd.xlane.f32.xlu0 %v2450
  %v2452 = vpop.xlane.xlu0 %2451
  %v2453 = vmul.f32 %v2449, %v67
  %v2454 = vmul.f32 %v2452, %v67
  %v2455 = vadd.f32 %v2453, 1e-12
  %v2456 = vadd.f32 %v2454, 1e-12
  %v2457 = vrsqrt.pop %v2455
  %v2458 = vrsqrt.pop %v2456
  %v2459 = vmul.f32 %v2443, %v2457
  %v2460 = vmul.f32 %v2444, %v2458
  %v2462 = vlaneseq
  %v2463 = vshrl.u32 %v2462, 7
  %v2464 = vsub.s32 0, %v2463
  %v2465 = vrot.slane %v2432, %v2464
  %v2467 = vmul.f32 %v2459, %v2465
  %v2468 = vmul.f32 %v2460, %v2465
  %v2470 = vlaneseq
  %v2471 = vshrl.u32 %v2470, 7
  %v2472 = vsub.s32 0, %v2471
  %v2473 = vrot.slane %v2434, %v2472
  %v2475 = vadd.f32 %v2467, %v2473
  %v2476 = vadd.f32 %v2468, %v2473
  %2477 = vst.msk [vmem:[%s17] sm:$0xff] %vm60, %v2475
  %2478 = vst.msk [vmem:[%s17 + $0x8] sm:$0xff] %vm60, %v2476
  // Predicated region
  $region70: #{language_embedding_layer.1} parent=0 // pred_check
    _
  $region71: #{language_embedding_layer.1} parent=0 // pred_check_branch
    %2480 = sbr.rel (0) target = $region73
  $region72: #{language_embedding_layer.1} parent=0 // pred_region
    _
  $region73: #{language_embedding_layer.1} parent=0 // pred_fallthru
    _
  // Predicated region
  $region74: #{language_embedding_layer.1} parent=0 // pred_check
    _
  $region75: #{language_embedding_layer.1} parent=0 // pred_check_branch
    %2482 = sbr.rel (0) target = $region77
  $region76: #{language_embedding_layer.1} parent=0 // pred_region
    _
  $region77: #{language_embedding_layer.1} parent=0 // pred_fallthru
    _

</llo_original>
